<compile_context>
chip_gen: v7x
topology: tpu7x:2x2x1
jax: 0.10.0
libtpu: 0.0.40
codegen_flags: <defaults>
</compile_context>

<pallas_src>
import functools

import jax
import jax.numpy as jnp
import numpy as np
from jax.experimental import pallas as pl
from jax.experimental.pallas import tpu as pltpu


# ----------------------------------------------------------------------------
# helpers
# ----------------------------------------------------------------------------
def _round_up(x, m):
    return (x + m - 1) // m * m


def _pick_tn(E, target=512):
    """Pick an output-feature tile: lane-dense (multiple of 128) divisor of E."""
    if E <= target:
        return E                       # single tile == full dim (always legal)
    for cand in (512, 384, 256, 128):
        if cand <= target and E % cand == 0:
            return cand
    return 128                         # fallback: relies on masked edge blocks


# ----------------------------------------------------------------------------
# Pallas kernel: fused text-proj / patch-proj with per-tile dispatch
# ----------------------------------------------------------------------------
def _patch_embed_kernel(xt_ref, xi_ref, wt_ref, wi_ref, bt_ref, bi_ref, o_ref,
                        *, S, tm):
    """One (batch, E-tile, row-tile) step of the fused embed.

    xt_ref: (1, tm, Dt)  bf16 text rows (row-tile, clamped in image region)
    xi_ref: (1, tm, K)   bf16 patch rows (row-tile, clamped in text region)
    wt_ref: (Dt, tn)     bf16 text weight tile
    wi_ref: (K, tn)      bf16 patch weight tile
    bt_ref/bi_ref: (1, tn) f32 biases
    o_ref:  (1, tm, tn)  output tile
    """
    i = pl.program_id(2)
    row0 = i * tm                       # first global sequence row of this tile

    pure_text = row0 + tm <= S
    pure_image = row0 >= S

    def _text():
        acc = jnp.dot(xt_ref[0], wt_ref[...], preferred_element_type=jnp.float32)
        return acc + bt_ref[...]

    def _image():
        acc = jnp.dot(xi_ref[0], wi_ref[...], preferred_element_type=jnp.float32)
        return acc + bi_ref[...]

    @pl.when(pure_text)
    def _():
        o_ref[0] = _text().astype(o_ref.dtype)

    @pl.when(pure_image)
    def _():
        o_ref[0] = _image().astype(o_ref.dtype)

    # At most one row-tile per batch straddles the text/image boundary.
    @pl.when(jnp.logical_and(jnp.logical_not(pure_text), jnp.logical_not(pure_image)))
    def _():
        rows = row0 + jax.lax.broadcasted_iota(jnp.int32, (tm, 1), 0)
        o_ref[0] = jnp.where(rows < S, _text(), _image()).astype(o_ref.dtype)


# ----------------------------------------------------------------------------
# weight preparation (do once, outside the per-call hot path)
# ----------------------------------------------------------------------------
def prepare_params(params):
    """Pre-transpose / pre-cast the projection weights for the kernel."""
    E, C, p, _ = params["proj_w"].shape
    return {
        "w_text": jnp.asarray(params["text_w"]).T.astype(jnp.bfloat16),        # (Dt, E)
        "b_text": jnp.asarray(params["text_b"]).reshape(1, E).astype(jnp.float32),
        "w_img": jnp.asarray(params["proj_w"]).reshape(E, C * p * p).T.astype(jnp.bfloat16),  # (K, E)
        "b_img": jnp.asarray(params["proj_b"]).reshape(1, E).astype(jnp.float32),
    }


# ----------------------------------------------------------------------------
# CogVideoXPatchEmbed forward
# ----------------------------------------------------------------------------
def cogvideox_patch_embed(text_embeds, image_embeds, prepared, *,
                          patch_size, tm_target=256, tn_target=512):
    """
    text_embeds:  (B, S, text_embed_dim)
    image_embeds: (B, F, C, H, W)
    prepared:     output of prepare_params()
    returns:      (B, S + F*(H//p)*(W//p), E)
    """
    p = patch_size
    B, S, Dt = text_embeds.shape
    _, F, C, H, W = image_embeds.shape
    Hp, Wp = H // p, W // p
    T = F * Hp * Wp
    K = C * p * p
    E = prepared["w_text"].shape[1]
    S_total = S + T
    out_dtype = text_embeds.dtype

    # ---- tile sizes (VMEM-aware: tiled E keeps weight tiles small) ----
    tm = tm_target if S_total >= tm_target else _round_up(S_total, 8)
    tn = _pick_tn(E, tn_target)

    n_i = pl.cdiv(S_total, tm)          # row tiles over the full sequence
    n_j = pl.cdiv(E, tn)                # output-feature tiles
    n_tb = pl.cdiv(S, tm)               # row tiles containing text rows
    ib = S // tm                        # first row tile containing image rows
    pad_front = S - ib * tm             # image rows offset inside tile `ib`
    n_ib = n_i - ib                     # image row tiles

    # ---- text rows: pad to whole tiles, cast to bf16 for the MXU ----
    xt = jnp.pad(text_embeds, ((0, 0), (0, n_tb * tm - S), (0, 0)))
    xt = xt.astype(jnp.bfloat16)

    # ---- patchify: (B,F,C,H,W) -> (B, T, C*p*p), tokens ordered (f, hp, wp) ----
    # TODO(synk): fold the patchify transpose into the kernel DMA (gather-style
    # index_map) to avoid one extra HBM round trip of the latents.
    xi = image_embeds.reshape(B, F, C, Hp, p, Wp, p)
    xi = xi.transpose(0, 1, 3, 5, 2, 4, 6).reshape(B, T, K)
    # front-pad so image rows line up with the global row tiling; back-pad to tiles
    xi = jnp.pad(xi, ((0, 0), (pad_front, n_ib * tm - pad_front - T), (0, 0)))
    xi = xi.astype(jnp.bfloat16)

    kernel = functools.partial(_patch_embed_kernel, S=S, tm=tm)

    out = pl.pallas_call(
        kernel,
        out_shape=jax.ShapeDtypeStruct((B, S_total, E), out_dtype),
        grid=(B, n_j, n_i),             # row tiles innermost -> weight tiles reused
        in_specs=[
            # text rows: clamp to last text block once inside the image region
            pl.BlockSpec((1, tm, Dt), lambda b, j, i: (b, jnp.minimum(i, n_tb - 1), 0)),
            # patch rows: clamp to block 0 while still inside the text region
            pl.BlockSpec((1, tm, K), lambda b, j, i: (b, jnp.maximum(i - ib, 0), 0)),
            pl.BlockSpec((Dt, tn), lambda b, j, i: (0, j)),   # text weight tile
            pl.BlockSpec((K, tn), lambda b, j, i: (0, j)),    # patch weight tile
            pl.BlockSpec((1, tn), lambda b, j, i: (0, j)),    # text bias tile
            pl.BlockSpec((1, tn), lambda b, j, i: (0, j)),    # patch bias tile
        ],
        out_specs=pl.BlockSpec((1, tm, tn), lambda b, j, i: (b, i, j)),
        compiler_params=pltpu.CompilerParams(
            dimension_semantics=("parallel", "parallel", "arbitrary"),
            vmem_limit_bytes=32 * 1024 * 1024,
        ),
    )(xt, xi, prepared["w_text"], prepared["w_img"],
      prepared["b_text"], prepared["b_img"])
    return out


# ----------------------------------------------------------------------------
# Reference (plain JAX, lax conv) for correctness
# ----------------------------------------------------------------------------
def reference(text_embeds, image_embeds, params, patch_size):
    p = patch_size
    B, S, Dt = text_embeds.shape
    _, F, C, H, W = image_embeds.shape
    E = params["proj_b"].shape[0]
    text_out = text_embeds @ params["text_w"].T + params["text_b"]
    x = image_embeds.reshape(B * F, C, H, W)
    y = jax.lax.conv_general_dilated(
        x, params["proj_w"], window_strides=(p, p), padding="VALID",
        dimension_numbers=("NCHW", "OIHW", "NCHW"))
    y = y + params["proj_b"].reshape(1, E, 1, 1)
    y = y.reshape(B, F, E, -1)              # (B, F, E, Hp*Wp)
    y = jnp.swapaxes(y, 2, 3)               # (B, F, Hp*Wp, E)
    y = y.reshape(B, F * y.shape[2], E)     # (B, F*Hp*Wp, E)
    return jnp.concatenate([text_out, y], axis=1)


# ----------------------------------------------------------------------------
if __name__ == "__main__":
    patch_size = 2
    in_channels = 4
    embed_dim = 32
    text_embed_dim = 64
    B, F, H, W = 2, 2, 16, 16
    S = 16

    key = jax.random.PRNGKey(0)
    k1, k2, k3, k4, k5, k6 = jax.random.split(key, 6)

    params = {
        "proj_w": jax.random.normal(
            k1, (embed_dim, in_channels, patch_size, patch_size), jnp.float32) * 0.05,
        "proj_b": jax.random.normal(k2, (embed_dim,), jnp.float32) * 0.01,
        "text_w": jax.random.normal(
            k3, (embed_dim, text_embed_dim), jnp.float32) * 0.05,
        "text_b": jax.random.normal(k4, (embed_dim,), jnp.float32) * 0.01,
    }

    text_embeds = jax.random.normal(k5, (B, S, text_embed_dim), jnp.float32)
    image_embeds = jax.random.normal(k6, (B, F, in_channels, H, W), jnp.float32)

    prepared = prepare_params(params)
    ref = reference(text_embeds, image_embeds, params, patch_size)
    expected_seq = S + F * (H // patch_size) * (W // patch_size)

    # Exercise the three kernel paths (single mixed tile / mixed + pure-image /
    # pure-text + pure-image) with tile sizes that divide the toy shapes.
    for tm_target in (256, 48, 8):
        fwd = jax.jit(functools.partial(
            cogvideox_patch_embed, patch_size=patch_size, tm_target=tm_target))
        out = jax.block_until_ready(fwd(text_embeds, image_embeds, prepared))
        assert out.shape == (B, expected_seq, embed_dim), out.shape
        np.testing.assert_allclose(np.asarray(out), np.asarray(ref),
                                   rtol=2e-2, atol=2e-2)

    print("KERNEL_OK")
</pallas_src>

<mosaic_0001>
module attributes {stable_mosaic.version = 11 : i64} {
  func.func @_patch_embed_kernel(%arg0: i32, %arg1: i32, %arg2: i32, %arg3: memref<1x144x64xbf16, #tpu.memory_space<vmem>>, %arg4: memref<1x144x16xbf16, #tpu.memory_space<vmem>>, %arg5: memref<64x32xbf16, #tpu.memory_space<vmem>>, %arg6: memref<16x32xbf16, #tpu.memory_space<vmem>>, %arg7: memref<1x32xf32, #tpu.memory_space<vmem>>, %arg8: memref<1x32xf32, #tpu.memory_space<vmem>>, %arg9: memref<1x144x32xf32, #tpu.memory_space<vmem>>) attributes {dimension_semantics = [#tpu.dimension_semantics<parallel>, #tpu.dimension_semantics<parallel>, #tpu.dimension_semantics<arbitrary>], iteration_bounds = array<i64: 2, 1, 1>, scalar_prefetch = 0 : i64, scratch_operands = 0 : i64, tpu.core_type = #tpu.core_type<tc>, window_params = [{transform_indices = @transform_0, window_bounds = array<i64: 1, 144, 64>}, {transform_indices = @transform_1, window_bounds = array<i64: 1, 144, 16>}, {transform_indices = @transform_2, window_bounds = array<i64: 64, 32>}, {transform_indices = @transform_3, window_bounds = array<i64: 16, 32>}, {transform_indices = @transform_4, window_bounds = array<i64: 1, 32>}, {transform_indices = @transform_5, window_bounds = array<i64: 1, 32>}, {transform_indices = @transform_6, window_bounds = array<i64: 1, 144, 32>}]} {
    %c144_i32 = arith.constant 144 : i32
    %0 = arith.muli %arg2, %c144_i32 : i32
    %c144_i32_0 = arith.constant 144 : i32
    %1 = arith.addi %0, %c144_i32_0 : i32
    %c16_i32 = arith.constant 16 : i32
    %2 = arith.cmpi sle, %1, %c16_i32 : i32
    %c16_i32_1 = arith.constant 16 : i32
    %3 = arith.cmpi sge, %0, %c16_i32_1 : i32
    %4 = arith.extui %2 : i1 to i32
    %c0_i32 = arith.constant 0 : i32
    %5 = arith.cmpi ne, %4, %c0_i32 : i32
    scf.if %5 {
      %c0 = arith.constant 0 : index
      %c0_5 = arith.constant 0 : index
      %c0_6 = arith.constant 0 : index
      %13 = vector.load %arg3[%c0, %c0_5, %c0_6] : memref<1x144x64xbf16, #tpu.memory_space<vmem>>, vector<1x144x64xbf16>
      %14 = vector.shape_cast %13 : vector<1x144x64xbf16> to vector<144x64xbf16>
      %c0_7 = arith.constant 0 : index
      %c0_8 = arith.constant 0 : index
      %15 = vector.load %arg5[%c0_7, %c0_8] : memref<64x32xbf16, #tpu.memory_space<vmem>>, vector<64x32xbf16>
      %cst = arith.constant dense<0.000000e+00> : vector<144x32xf32>
      %16 = tpu.matmul %14, %15, %cst {dimension_numbers = #tpu.dot_dimension_numbers<[1], [0], [0], [1], [0, 0, 1, 1], [], []>} : vector<144x64xbf16>, vector<64x32xbf16>, vector<144x32xf32> -> vector<144x32xf32>
      %c0_9 = arith.constant 0 : index
      %c0_10 = arith.constant 0 : index
      %17 = vector.load %arg7[%c0_9, %c0_10] : memref<1x32xf32, #tpu.memory_space<vmem>>, vector<1x32xf32>
      %18 = vector.broadcast %17 : vector<1x32xf32> to vector<144x32xf32>
      %19 = arith.addf %16, %18 : vector<144x32xf32>
      %c0_11 = arith.constant 0 : index
      %c0_12 = arith.constant 0 : index
      %c0_13 = arith.constant 0 : index
      %20 = vector.load %arg9[%c0_11, %c0_12, %c0_13] : memref<1x144x32xf32, #tpu.memory_space<vmem>>, vector<1x144x32xf32>
      %21 = vector.shape_cast %20 : vector<1x144x32xf32> to vector<144x32xf32>
      %22 = vector.shape_cast %19 : vector<144x32xf32> to vector<1x144x32xf32>
      tpu.vector_store %arg9[%c0_11, %c0_12, %c0_13], %22 {strides = array<i32>} : memref<1x144x32xf32, #tpu.memory_space<vmem>>, vector<1x144x32xf32>,
    } else {
    }
    %6 = arith.extui %3 : i1 to i32
    %c0_i32_2 = arith.constant 0 : i32
    %7 = arith.cmpi ne, %6, %c0_i32_2 : i32
    scf.if %7 {
      %c0 = arith.constant 0 : index
      %c0_5 = arith.constant 0 : index
      %c0_6 = arith.constant 0 : index
      %13 = vector.load %arg4[%c0, %c0_5, %c0_6] : memref<1x144x16xbf16, #tpu.memory_space<vmem>>, vector<1x144x16xbf16>
      %14 = vector.shape_cast %13 : vector<1x144x16xbf16> to vector<144x16xbf16>
      %c0_7 = arith.constant 0 : index
      %c0_8 = arith.constant 0 : index
      %15 = vector.load %arg6[%c0_7, %c0_8] : memref<16x32xbf16, #tpu.memory_space<vmem>>, vector<16x32xbf16>
      %cst = arith.constant dense<0.000000e+00> : vector<144x32xf32>
      %16 = tpu.matmul %14, %15, %cst {dimension_numbers = #tpu.dot_dimension_numbers<[1], [0], [0], [1], [0, 0, 1, 1], [], []>} : vector<144x16xbf16>, vector<16x32xbf16>, vector<144x32xf32> -> vector<144x32xf32>
      %c0_9 = arith.constant 0 : index
      %c0_10 = arith.constant 0 : index
      %17 = vector.load %arg8[%c0_9, %c0_10] : memref<1x32xf32, #tpu.memory_space<vmem>>, vector<1x32xf32>
      %18 = vector.broadcast %17 : vector<1x32xf32> to vector<144x32xf32>
      %19 = arith.addf %16, %18 : vector<144x32xf32>
      %c0_11 = arith.constant 0 : index
      %c0_12 = arith.constant 0 : index
      %c0_13 = arith.constant 0 : index
      %20 = vector.load %arg9[%c0_11, %c0_12, %c0_13] : memref<1x144x32xf32, #tpu.memory_space<vmem>>, vector<1x144x32xf32>
      %21 = vector.shape_cast %20 : vector<1x144x32xf32> to vector<144x32xf32>
      %22 = vector.shape_cast %19 : vector<144x32xf32> to vector<1x144x32xf32>
      tpu.vector_store %arg9[%c0_11, %c0_12, %c0_13], %22 {strides = array<i32>} : memref<1x144x32xf32, #tpu.memory_space<vmem>>, vector<1x144x32xf32>,
    } else {
    }
    %true = arith.constant true
    %8 = arith.xori %2, %true : i1
    %true_3 = arith.constant true
    %9 = arith.xori %3, %true_3 : i1
    %10 = arith.andi %8, %9 : i1
    %11 = arith.extui %10 : i1 to i32
    %c0_i32_4 = arith.constant 0 : i32
    %12 = arith.cmpi ne, %11, %c0_i32_4 : i32
    scf.if %12 {
      %13 = tpu.iota {dimensions = array<i32: 0>} : vector<144x1xi32>
      %14 = vector.broadcast %0 : i32 to vector<144x1xi32>
      %15 = arith.addi %14, %13 : vector<144x1xi32>
      %c16_i32_5 = arith.constant 16 : i32
      %16 = vector.broadcast %c16_i32_5 : i32 to vector<144x1xi32>
      %17 = arith.cmpi slt, %15, %16 : vector<144x1xi32>
      %c0 = arith.constant 0 : index
      %c0_6 = arith.constant 0 : index
      %c0_7 = arith.constant 0 : index
      %18 = vector.load %arg3[%c0, %c0_6, %c0_7] : memref<1x144x64xbf16, #tpu.memory_space<vmem>>, vector<1x144x64xbf16>
      %19 = vector.shape_cast %18 : vector<1x144x64xbf16> to vector<144x64xbf16>
      %c0_8 = arith.constant 0 : index
      %c0_9 = arith.constant 0 : index
      %20 = vector.load %arg5[%c0_8, %c0_9] : memref<64x32xbf16, #tpu.memory_space<vmem>>, vector<64x32xbf16>
      %cst = arith.constant dense<0.000000e+00> : vector<144x32xf32>
      %21 = tpu.matmul %19, %20, %cst {dimension_numbers = #tpu.dot_dimension_numbers<[1], [0], [0], [1], [0, 0, 1, 1], [], []>} : vector<144x64xbf16>, vector<64x32xbf16>, vector<144x32xf32> -> vector<144x32xf32>
      %c0_10 = arith.constant 0 : index
      %c0_11 = arith.constant 0 : index
      %22 = vector.load %arg7[%c0_10, %c0_11] : memref<1x32xf32, #tpu.memory_space<vmem>>, vector<1x32xf32>
      %23 = vector.broadcast %22 : vector<1x32xf32> to vector<144x32xf32>
      %24 = arith.addf %21, %23 : vector<144x32xf32>
      %c0_12 = arith.constant 0 : index
      %c0_13 = arith.constant 0 : index
      %c0_14 = arith.constant 0 : index
      %25 = vector.load %arg4[%c0_12, %c0_13, %c0_14] : memref<1x144x16xbf16, #tpu.memory_space<vmem>>, vector<1x144x16xbf16>
      %26 = vector.shape_cast %25 : vector<1x144x16xbf16> to vector<144x16xbf16>
      %c0_15 = arith.constant 0 : index
      %c0_16 = arith.constant 0 : index
      %27 = vector.load %arg6[%c0_15, %c0_16] : memref<16x32xbf16, #tpu.memory_space<vmem>>, vector<16x32xbf16>
      %cst_17 = arith.constant dense<0.000000e+00> : vector<144x32xf32>
      %28 = tpu.matmul %26, %27, %cst_17 {dimension_numbers = #tpu.dot_dimension_numbers<[1], [0], [0], [1], [0, 0, 1, 1], [], []>} : vector<144x16xbf16>, vector<16x32xbf16>, vector<144x32xf32> -> vector<144x32xf32>
      %c0_18 = arith.constant 0 : index
      %c0_19 = arith.constant 0 : index
      %29 = vector.load %arg8[%c0_18, %c0_19] : memref<1x32xf32, #tpu.memory_space<vmem>>, vector<1x32xf32>
      %30 = vector.broadcast %29 : vector<1x32xf32> to vector<144x32xf32>
      %31 = arith.addf %28, %30 : vector<144x32xf32>
      %32 = vector.shape_cast %17 : vector<144x1xi1> to vector<144x1xi1>
      %33 = vector.broadcast %32 : vector<144x1xi1> to vector<144x32xi1>
      %34 = arith.select %33, %24, %31 : vector<144x32xi1>, vector<144x32xf32>
      %c0_20 = arith.constant 0 : index
      %c0_21 = arith.constant 0 : index
      %c0_22 = arith.constant 0 : index
      %35 = vector.load %arg9[%c0_20, %c0_21, %c0_22] : memref<1x144x32xf32, #tpu.memory_space<vmem>>, vector<1x144x32xf32>
      %36 = vector.shape_cast %35 : vector<1x144x32xf32> to vector<144x32xf32>
      %37 = vector.shape_cast %34 : vector<144x32xf32> to vector<1x144x32xf32>
      tpu.vector_store %arg9[%c0_20, %c0_21, %c0_22], %37 {strides = array<i32>} : memref<1x144x32xf32, #tpu.memory_space<vmem>>, vector<1x144x32xf32>,
    } else {
    }
    return
  }
  func.func @transform_0(%arg0: i32, %arg1: i32, %arg2: i32) -> (i32, i32, i32) {
    %c0_i32 = arith.constant 0 : i32
    %0 = arith.minsi %arg2, %c0_i32 : i32
    %c0_i32_0 = arith.constant 0 : i32
    %c0_i32_1 = arith.constant 0 : i32
    return %arg0, %0, %c0_i32_0 : i32, i32, i32
  }
  func.func @transform_1(%arg0: i32, %arg1: i32, %arg2: i32) -> (i32, i32, i32) {
    %c0_i32 = arith.constant 0 : i32
    %0 = arith.subi %arg2, %c0_i32 : i32
    %c0_i32_0 = arith.constant 0 : i32
    %1 = arith.maxsi %0, %c0_i32_0 : i32
    %c0_i32_1 = arith.constant 0 : i32
    %c0_i32_2 = arith.constant 0 : i32
    return %arg0, %1, %c0_i32_1 : i32, i32, i32
  }
  func.func @transform_2(%arg0: i32, %arg1: i32, %arg2: i32) -> (i32, i32) {
    %c0_i32 = arith.constant 0 : i32
    %c0_i32_0 = arith.constant 0 : i32
    return %c0_i32, %arg1 : i32, i32
  }
  func.func @transform_3(%arg0: i32, %arg1: i32, %arg2: i32) -> (i32, i32) {
    %c0_i32 = arith.constant 0 : i32
    %c0_i32_0 = arith.constant 0 : i32
    return %c0_i32, %arg1 : i32, i32
  }
  func.func @transform_4(%arg0: i32, %arg1: i32, %arg2: i32) -> (i32, i32) {
    %c0_i32 = arith.constant 0 : i32
    %c0_i32_0 = arith.constant 0 : i32
    return %c0_i32, %arg1 : i32, i32
  }
  func.func @transform_5(%arg0: i32, %arg1: i32, %arg2: i32) -> (i32, i32) {
    %c0_i32 = arith.constant 0 : i32
    %c0_i32_0 = arith.constant 0 : i32
    return %c0_i32, %arg1 : i32, i32
  }
  func.func @transform_6(%arg0: i32, %arg1: i32, %arg2: i32) -> (i32, i32, i32) {
    %c0_i32 = arith.constant 0 : i32
    return %arg0, %arg2, %arg1 : i32, i32, i32
  }
}

</mosaic_0001>

<llo_original>
// kernel: cogvideox_patch_embed.1
$region0: #{cogvideox_patch_embed.1}
  #allocation0 [shape = 'u32[]', space=smem, size = 0x4, offset = 0x4, fixed_abs, tag = 'smem constant byte address 0x4 - core index']
  #allocation1 [shape = 'u32[144,128]{1,0:T(1,128)}', space=vmem, size = 0x12000, scoped, tag = 'internal scratch']
  %s0 = inlined_call_operand.vmem [shape: bf16[2,144,64], index: 0, kind: input, shape index: {}]
  %s1 = inlined_call_operand.vmem [shape: bf16[2,144,16], index: 1, kind: input, shape index: {}]
  %s2 = inlined_call_operand.vmem [shape: bf16[64,32], index: 2, kind: input, shape index: {}]
  %s3 = inlined_call_operand.vmem [shape: bf16[16,32], index: 3, kind: input, shape index: {}]
  %s4 = inlined_call_operand.vmem [shape: f32[1,32], index: 4, kind: input, shape index: {}]
  %s5 = inlined_call_operand.vmem [shape: f32[1,32], index: 5, kind: input, shape index: {}]
  %s6 = inlined_call_operand.vmem [shape: f32[2,144,32], index: 6, kind: output, shape index: {}]
  %s7 = sld [smem:[#allocation0]]
  $region69: #{cogvideox_patch_embed.1} parent=0
    _
  %s9 = ssub.s32 1, %s7
  %s10 = scalar_select 0, %s9, %s7
  loop: start=0, step=1, limit=4
  $region2: #{cogvideox_patch_embed.1} parent=0 // loop_pre_header
    _
  $region3: #{cogvideox_patch_embed.1} parent=0 // loop_header
    %s12 = sphi 0, %s16
    %p13 = scmp.ge.s32.totalorder %s12, 4
    %s19 = sphi 0, %s38
    %s20 = sphi 0, %s34
    %s21 = sphi 0, %s30
    %s22 = sphi 0, %s19
    %s23 = sphi 0, %s20
    %s24 = sphi 0, %s21
    %s25 = sphi 0, %s22
    %s26 = sphi 0, %s23
    %s27 = sphi 0, %s24
    %s47 = sphi 0, %s49
    %s50 = sphi 0, %s47
    %s51 = sphi 0, %s50
    %s67 = sphi 0, %s51
    %s79 = sphi 0, %s81
    %s82 = sphi 0, %s79
    %s83 = sphi 0, %s82
    %s99 = sphi 0, %s83
    %s105 = sphi 0, %s107
    %s108 = sphi 0, %s105
    %s109 = sphi 0, %s108
    %s125 = sphi 0, %s109
    %s131 = sphi 0, %s133
    %s134 = sphi 0, %s131
    %s135 = sphi 0, %s134
    %s151 = sphi 0, %s135
    %s157 = sphi 0, %s159
    %s160 = sphi 0, %s157
    %s161 = sphi 0, %s160
    %s177 = sphi 0, %s161
    %s183 = sphi 0, %s185
    %s186 = sphi 0, %s183
    %s187 = sphi 0, %s186
    %s203 = sphi 0, %s187
    %s213 = sphi 0, %s215
    %s216 = sphi 0, %s213
    %s217 = sphi 0, %s216
    %s233 = sphi 0, %s217
  $region4: #{cogvideox_patch_embed.1} parent=0 // loop_header_branch
    %15 = sbr.rel (%p13) target = $region8
  $region5: #{cogvideox_patch_embed.1} parent=0 // loop_body
    %s17 = ssub.s32 %s12, 1
    %s18 = ssub.s32 %s12, 2
    %s28 = sadd.s32 1, %s21
    %p29 = scmp.ge.s32.totalorder %s28, 1
    %s30 = scalar_select %p29, 0, %s28
    %s31 = sadd.s32 1, %s20
    %s32 = scalar_select %p29, %s31, %s20
    %p33 = scmp.ge.s32.totalorder %s32, 1
    %s34 = scalar_select %p33, 0, %s32
    %s35 = sadd.s32 1, %s19
    %s36 = scalar_select %p33, %s35, %s19
    %p37 = scmp.ge.s32.totalorder %s36, 2
    %s38 = scalar_select %p37, 0, %s36
    %p39 = scmp.lt.s32.totalorder %s21, 0
    %s40 = scalar_select %p39, %s21, 0
    %p41 = scmp.lt.s32.totalorder %s30, 0
    %s42 = scalar_select %p41, %s30, 0
    %s43 = ssub.s32 %s19, %s38
    %s44 = ssub.s32 %s40, %s42
    %s45 = sor.u32 %s43, %s44
    %p46 = scmp.eq.s32.totalorder %s45, 0
    %s48 = sadd.s32 %s47, 1
    %s49 = scalar_select %p46, %s47, %s48
    %p52 = pneg %p46
    %p53 = scmp.eq.s32.totalorder %s12, 1
    %p54 = por %p52, %p53
    %p55 = scmp.ne.s32.totalorder %s47, %s50
    %p56 = scmp.eq.s32.totalorder %s12, 0
    %p57 = por %p55, %p56
    %p58 = scmp.ne.s32.totalorder %s47, %s50
    %p59 = scmp.eq.s32.totalorder %s17, 1
    %p60 = por %p58, %p59
    %p61 = scmp.ne.s32.totalorder %s50, %s51
    %p62 = scmp.eq.s32.totalorder %s17, 0
    %p63 = por %p61, %p62
    %p64 = scmp.ne.s32.totalorder %s50, %s51
    %p65 = scmp.eq.s32.totalorder %s18, 1
    %p66 = por %p64, %p65
    %p68 = scmp.ne.s32.totalorder %s51, %s67
    %p69 = scmp.eq.s32.totalorder %s18, 0
    %p70 = por %p68, %p69
    %p71 = scmp.gt.s32.totalorder %s21, 0
    %s72 = scalar_select %p71, %s21, 0
    %p73 = scmp.gt.s32.totalorder %s30, 0
    %s74 = scalar_select %p73, %s30, 0
    %s75 = ssub.s32 %s19, %s38
    %s76 = ssub.s32 %s72, %s74
    %s77 = sor.u32 %s75, %s76
    %p78 = scmp.eq.s32.totalorder %s77, 0
    %s80 = sadd.s32 %s79, 1
    %s81 = scalar_select %p78, %s79, %s80
    %p84 = pneg %p78
    %p85 = scmp.eq.s32.totalorder %s12, 1
    %p86 = por %p84, %p85
    %p87 = scmp.ne.s32.totalorder %s79, %s82
    %p88 = scmp.eq.s32.totalorder %s12, 0
    %p89 = por %p87, %p88
    %p90 = scmp.ne.s32.totalorder %s79, %s82
    %p91 = scmp.eq.s32.totalorder %s17, 1
    %p92 = por %p90, %p91
    %p93 = scmp.ne.s32.totalorder %s82, %s83
    %p94 = scmp.eq.s32.totalorder %s17, 0
    %p95 = por %p93, %p94
    %p96 = scmp.ne.s32.totalorder %s82, %s83
    %p97 = scmp.eq.s32.totalorder %s18, 1
    %p98 = por %p96, %p97
    %p100 = scmp.ne.s32.totalorder %s83, %s99
    %p101 = scmp.eq.s32.totalorder %s18, 0
    %p102 = por %p100, %p101
    %s103 = ssub.s32 %s20, %s34
    %p104 = scmp.eq.s32.totalorder %s103, 0
    %s106 = sadd.s32 %s105, 1
    %s107 = scalar_select %p104, %s105, %s106
    %p110 = pneg %p104
    %p111 = scmp.eq.s32.totalorder %s12, 1
    %p112 = por %p110, %p111
    %p113 = scmp.ne.s32.totalorder %s105, %s108
    %p114 = scmp.eq.s32.totalorder %s12, 0
    %p115 = por %p113, %p114
    %p116 = scmp.ne.s32.totalorder %s105, %s108
    %p117 = scmp.eq.s32.totalorder %s17, 1
    %p118 = por %p116, %p117
    %p119 = scmp.ne.s32.totalorder %s108, %s109
    %p120 = scmp.eq.s32.totalorder %s17, 0
    %p121 = por %p119, %p120
    %p122 = scmp.ne.s32.totalorder %s108, %s109
    %p123 = scmp.eq.s32.totalorder %s18, 1
    %p124 = por %p122, %p123
    %p126 = scmp.ne.s32.totalorder %s109, %s125
    %p127 = scmp.eq.s32.totalorder %s18, 0
    %p128 = por %p126, %p127
    %s129 = ssub.s32 %s20, %s34
    %p130 = scmp.eq.s32.totalorder %s129, 0
    %s132 = sadd.s32 %s131, 1
    %s133 = scalar_select %p130, %s131, %s132
    %p136 = pneg %p130
    %p137 = scmp.eq.s32.totalorder %s12, 1
    %p138 = por %p136, %p137
    %p139 = scmp.ne.s32.totalorder %s131, %s134
    %p140 = scmp.eq.s32.totalorder %s12, 0
    %p141 = por %p139, %p140
    %p142 = scmp.ne.s32.totalorder %s131, %s134
    %p143 = scmp.eq.s32.totalorder %s17, 1
    %p144 = por %p142, %p143
    %p145 = scmp.ne.s32.totalorder %s134, %s135
    %p146 = scmp.eq.s32.totalorder %s17, 0
    %p147 = por %p145, %p146
    %p148 = scmp.ne.s32.totalorder %s134, %s135
    %p149 = scmp.eq.s32.totalorder %s18, 1
    %p150 = por %p148, %p149
    %p152 = scmp.ne.s32.totalorder %s135, %s151
    %p153 = scmp.eq.s32.totalorder %s18, 0
    %p154 = por %p152, %p153
    %s155 = ssub.s32 %s20, %s34
    %p156 = scmp.eq.s32.totalorder %s155, 0
    %s158 = sadd.s32 %s157, 1
    %s159 = scalar_select %p156, %s157, %s158
    %p162 = pneg %p156
    %p163 = scmp.eq.s32.totalorder %s12, 1
    %p164 = por %p162, %p163
    %p165 = scmp.ne.s32.totalorder %s157, %s160
    %p166 = scmp.eq.s32.totalorder %s12, 0
    %p167 = por %p165, %p166
    %p168 = scmp.ne.s32.totalorder %s157, %s160
    %p169 = scmp.eq.s32.totalorder %s17, 1
    %p170 = por %p168, %p169
    %p171 = scmp.ne.s32.totalorder %s160, %s161
    %p172 = scmp.eq.s32.totalorder %s17, 0
    %p173 = por %p171, %p172
    %p174 = scmp.ne.s32.totalorder %s160, %s161
    %p175 = scmp.eq.s32.totalorder %s18, 1
    %p176 = por %p174, %p175
    %p178 = scmp.ne.s32.totalorder %s161, %s177
    %p179 = scmp.eq.s32.totalorder %s18, 0
    %p180 = por %p178, %p179
    %s181 = ssub.s32 %s20, %s34
    %p182 = scmp.eq.s32.totalorder %s181, 0
    %s184 = sadd.s32 %s183, 1
    %s185 = scalar_select %p182, %s183, %s184
    %p188 = pneg %p182
    %p189 = scmp.eq.s32.totalorder %s12, 1
    %p190 = por %p188, %p189
    %p191 = scmp.ne.s32.totalorder %s183, %s186
    %p192 = scmp.eq.s32.totalorder %s12, 0
    %p193 = por %p191, %p192
    %p194 = scmp.ne.s32.totalorder %s183, %s186
    %p195 = scmp.eq.s32.totalorder %s17, 1
    %p196 = por %p194, %p195
    %p197 = scmp.ne.s32.totalorder %s186, %s187
    %p198 = scmp.eq.s32.totalorder %s17, 0
    %p199 = por %p197, %p198
    %p200 = scmp.ne.s32.totalorder %s186, %s187
    %p201 = scmp.eq.s32.totalorder %s18, 1
    %p202 = por %p200, %p201
    %p204 = scmp.ne.s32.totalorder %s187, %s203
    %p205 = scmp.eq.s32.totalorder %s18, 0
    %p206 = por %p204, %p205
    %s207 = ssub.s32 %s19, %s38
    %s208 = ssub.s32 %s21, %s30
    %s209 = sor.u32 %s207, %s208
    %s210 = ssub.s32 %s20, %s34
    %s211 = sor.u32 %s209, %s210
    %p212 = scmp.eq.s32.totalorder %s211, 0
    %s214 = sadd.s32 %s213, 1
    %s215 = scalar_select %p212, %s213, %s214
    %p218 = pneg %p212
    %p219 = scmp.eq.s32.totalorder %s12, 1
    %p220 = por %p218, %p219
    %p221 = scmp.ne.s32.totalorder %s213, %s216
    %p222 = scmp.eq.s32.totalorder %s12, 0
    %p223 = por %p221, %p222
    %p224 = scmp.ne.s32.totalorder %s213, %s216
    %p225 = scmp.eq.s32.totalorder %s17, 1
    %p226 = por %p224, %p225
    %p227 = scmp.ne.s32.totalorder %s216, %s217
    %p228 = scmp.eq.s32.totalorder %s17, 0
    %p229 = por %p227, %p228
    %p230 = scmp.ne.s32.totalorder %s216, %s217
    %p231 = scmp.eq.s32.totalorder %s18, 1
    %p232 = por %p230, %p231
    %p234 = scmp.ne.s32.totalorder %s217, %s233
    %p235 = scmp.eq.s32.totalorder %s18, 0
    %p236 = por %p234, %p235
    %p237 = scmp.le.s32.totalorder 1, %s12
    %p238 = scmp.lt.s32.totalorder %s12, 3
    %p239 = pnand %p237, %p238
    %p240 = pneg %p239
    // Predicated region
    $region9: #{cogvideox_patch_embed.1} parent=5 // pred_check
      _
    $region10: #{cogvideox_patch_embed.1} parent=5 // pred_check_branch
      %242 = sbr.rel (%p239) target = $region12
    $region11: #{cogvideox_patch_embed.1} parent=5 // pred_region
      %s243 = ssub.s32 %s12, 1
      // Predicated region
      $region13: #{cogvideox_patch_embed.1} parent=11 // pred_check
        %p244 = pneg %p121
      $region14: #{cogvideox_patch_embed.1} parent=11 // pred_check_branch
        %246 = sbr.rel (%p244) target = $region16
      $region15: #{cogvideox_patch_embed.1} parent=11 // pred_region
        %p247 = scmp.lt.s32.totalorder %s23, 0
        %s248 = scalar_select %p247, %s23, 0
        %s249 = smul.addr %s248, 4
        %s250 = scalar_lea.vmem %s2, %s249
      $region16: #{cogvideox_patch_embed.1} parent=11 // pred_fallthru
        _
      // Predicated region
      $region17: #{cogvideox_patch_embed.1} parent=11 // pred_check
        %p251 = pneg %p147
      $region18: #{cogvideox_patch_embed.1} parent=11 // pred_check_branch
        %253 = sbr.rel (%p251) target = $region20
      $region19: #{cogvideox_patch_embed.1} parent=11 // pred_region
        %p254 = scmp.lt.s32.totalorder %s23, 0
        %s255 = scalar_select %p254, %s23, 0
        %s256 = smul.addr %s255, 4
        %s257 = scalar_lea.vmem %s3, %s256
      $region20: #{cogvideox_patch_embed.1} parent=11 // pred_fallthru
        _
      // Predicated region
      $region21: #{cogvideox_patch_embed.1} parent=11 // pred_check
        %p258 = pneg %p173
      $region22: #{cogvideox_patch_embed.1} parent=11 // pred_check_branch
        %260 = sbr.rel (%p258) target = $region24
      $region23: #{cogvideox_patch_embed.1} parent=11 // pred_region
        %p261 = scmp.lt.s32.totalorder %s23, 0
        %s262 = scalar_select %p261, %s23, 0
        %s263 = scalar_lea.vmem %s4, %s262
      $region24: #{cogvideox_patch_embed.1} parent=11 // pred_fallthru
        _
      // Predicated region
      $region25: #{cogvideox_patch_embed.1} parent=11 // pred_check
        %p264 = pneg %p199
      $region26: #{cogvideox_patch_embed.1} parent=11 // pred_check_branch
        %266 = sbr.rel (%p264) target = $region28
      $region27: #{cogvideox_patch_embed.1} parent=11 // pred_region
        %p267 = scmp.lt.s32.totalorder %s23, 0
        %s268 = scalar_select %p267, %s23, 0
        %s269 = scalar_lea.vmem %s5, %s268
      $region28: #{cogvideox_patch_embed.1} parent=11 // pred_fallthru
        _
    $region12: #{cogvideox_patch_embed.1} parent=5 // pred_fallthru
      _
    %p270 = scmp.lt.s32.totalorder %s12, 2
    // Predicated region
    $region29: #{cogvideox_patch_embed.1} parent=5 // pred_check
      %p271 = pneg %p270
    $region30: #{cogvideox_patch_embed.1} parent=5 // pred_check_branch
      %273 = sbr.rel (%p271) target = $region32
    $region31: #{cogvideox_patch_embed.1} parent=5 // pred_region
      // Predicated region
      $region33: #{cogvideox_patch_embed.1} parent=31 // pred_check
        %p274 = pneg %p57
      $region34: #{cogvideox_patch_embed.1} parent=31 // pred_check_branch
        %276 = sbr.rel (%p274) target = $region36
      $region35: #{cogvideox_patch_embed.1} parent=31 // pred_region
        %p277 = scmp.lt.s32.totalorder %s21, 0
        %s278 = scalar_select %p277, %s21, 0
        %s279 = smul.u32 18, %s278
        %p280 = scmp.lt.s32.totalorder %s19, 1
        %s281 = scalar_select %p280, %s19, 1
        %p282 = scmp.lt.s32.totalorder %s279, 17
        %s283 = scalar_select %p282, %s279, 17
        %s284 = smul.addr %s281, 18
        %s285 = sadd.s32 %s283, %s284
        %s286 = smul.addr %s285, 4
        %s287 = scalar_lea.vmem %s0, %s286
        %p288 = scmp.lt.s32.totalorder %s21, 0
        %s289 = scalar_select %p288, %s21, 0
        %s290 = smul.u32 18, %s289
      $region36: #{cogvideox_patch_embed.1} parent=31 // pred_fallthru
        _
      // Predicated region
      $region37: #{cogvideox_patch_embed.1} parent=31 // pred_check
        %p291 = pneg %p89
      $region38: #{cogvideox_patch_embed.1} parent=31 // pred_check_branch
        %293 = sbr.rel (%p291) target = $region40
      $region39: #{cogvideox_patch_embed.1} parent=31 // pred_region
        %p294 = scmp.gt.s32.totalorder %s21, 0
        %s295 = scalar_select %p294, %s21, 0
        %s296 = smul.u32 18, %s295
        %p297 = scmp.lt.s32.totalorder %s19, 1
        %s298 = scalar_select %p297, %s19, 1
        %p299 = scmp.lt.s32.totalorder %s296, 17
        %s300 = scalar_select %p299, %s296, 17
        %s301 = smul.addr %s298, 18
        %s302 = sadd.s32 %s300, %s301
        %s303 = smul.addr %s302, 4
        %s304 = scalar_lea.vmem %s1, %s303
        %p305 = scmp.gt.s32.totalorder %s21, 0
        %s306 = scalar_select %p305, %s21, 0
        %s307 = smul.u32 18, %s306
      $region40: #{cogvideox_patch_embed.1} parent=31 // pred_fallthru
        _
    $region32: #{cogvideox_patch_embed.1} parent=5 // pred_fallthru
      _
    %p308 = scmp.le.s32.totalorder 1, %s12
    %p309 = scmp.lt.s32.totalorder %s12, 3
    %p310 = pnand %p308, %p309
    %p311 = pneg %p310
    // Predicated region
    $region41: #{cogvideox_patch_embed.1} parent=5 // pred_check
      _
    $region42: #{cogvideox_patch_embed.1} parent=5 // pred_check_branch
      %313 = sbr.rel (%p310) target = $region44
    $region43: #{cogvideox_patch_embed.1} parent=5 // pred_region
      %s314 = ssub.s32 %s12, 1
      %p315 = scmp.lt.s32.totalorder %s24, 0
      %s316 = scalar_select %p315, %s24, 0
      %s317 = smul.u32 18, %s316
      %p318 = scmp.lt.s32.totalorder %s22, 1
      %s319 = scalar_select %p318, %s22, 1
      %p320 = scmp.lt.s32.totalorder %s317, 17
      %s321 = scalar_select %p320, %s317, 17
      %s322 = smul.addr %s319, 18
      %s323 = sadd.s32 %s321, %s322
      %s324 = smul.addr %s323, 4
      %s325 = scalar_lea.vmem %s0, %s324
      %p326 = pneg %p63
      %p327 = pneg %p60
      %p328 = scmp.gt.s32.totalorder %s24, 0
      %s329 = scalar_select %p328, %s24, 0
      %s330 = smul.u32 18, %s329
      %p331 = scmp.lt.s32.totalorder %s22, 1
      %s332 = scalar_select %p331, %s22, 1
      %p333 = scmp.lt.s32.totalorder %s330, 17
      %s334 = scalar_select %p333, %s330, 17
      %s335 = smul.addr %s332, 18
      %s336 = sadd.s32 %s334, %s335
      %s337 = smul.addr %s336, 4
      %s338 = scalar_lea.vmem %s1, %s337
      %p339 = pneg %p95
      %p340 = pneg %p92
      %p341 = scmp.lt.s32.totalorder %s23, 0
      %s342 = scalar_select %p341, %s23, 0
      %s343 = smul.addr %s342, 4
      %s344 = scalar_lea.vmem %s2, %s343
      %p345 = pneg %p121
      %p346 = pneg %p118
      %p347 = scmp.lt.s32.totalorder %s23, 0
      %s348 = scalar_select %p347, %s23, 0
      %s349 = smul.addr %s348, 4
      %s350 = scalar_lea.vmem %s3, %s349
      %p351 = pneg %p147
      %p352 = pneg %p144
      %p353 = scmp.lt.s32.totalorder %s23, 0
      %s354 = scalar_select %p353, %s23, 0
      %s355 = scalar_lea.vmem %s4, %s354
      %p356 = pneg %p173
      %p357 = pneg %p170
      %p358 = scmp.lt.s32.totalorder %s23, 0
      %s359 = scalar_select %p358, %s23, 0
      %s360 = scalar_lea.vmem %s5, %s359
      %p361 = pneg %p199
      %p362 = pneg %p196
      %p363 = pneg %p229
      %p364 = pneg %p226
      %s365 = smul.u32 18, %s24
      %p366 = scmp.lt.s32.totalorder %s22, 1
      %s367 = scalar_select %p366, %s22, 1
      %p368 = scmp.lt.s32.totalorder %s365, 17
      %s369 = scalar_select %p368, %s365, 17
      %p370 = scmp.lt.s32.totalorder %s23, 0
      %s371 = scalar_select %p370, %s23, 0
      %s372 = sadd.s32 %s371, %s369
      %s373 = smul.addr %s367, 18
      %s374 = sadd.s32 %s372, %s373
      %s375 = smul.addr %s374, 8
      %s376 = scalar_lea.vmem %s6, %s375
      %p377 = scmp.lt.s32.totalorder %s24, 0
      %s378 = scalar_select %p377, %s24, 0
      %s379 = smul.u32 18, %s378
      %p380 = scmp.lt.s32.totalorder %s22, 1
      %s381 = scalar_select %p380, %s22, 1
      %p382 = scmp.lt.s32.totalorder %s379, 17
      %s383 = scalar_select %p382, %s379, 17
      %s384 = smul.addr %s381, 18
      %s385 = sadd.s32 %s383, %s384
      %s386 = smul.addr %s385, 4
      %s387 = scalar_lea.vmem %s0, %s386
      %p388 = scmp.lt.s32.totalorder %s24, 0
      %s389 = scalar_select %p388, %s24, 0
      %s390 = smul.u32 18, %s389
      %p391 = scmp.gt.s32.totalorder %s24, 0
      %s392 = scalar_select %p391, %s24, 0
      %s393 = smul.u32 18, %s392
      %p394 = scmp.lt.s32.totalorder %s22, 1
      %s395 = scalar_select %p394, %s22, 1
      %p396 = scmp.lt.s32.totalorder %s393, 17
      %s397 = scalar_select %p396, %s393, 17
      %s398 = smul.addr %s395, 18
      %s399 = sadd.s32 %s397, %s398
      %s400 = smul.addr %s399, 4
      %s401 = scalar_lea.vmem %s1, %s400
      %p402 = scmp.gt.s32.totalorder %s24, 0
      %s403 = scalar_select %p402, %s24, 0
      %s404 = smul.u32 18, %s403
      %p405 = scmp.lt.s32.totalorder %s23, 0
      %s406 = scalar_select %p405, %s23, 0
      %s407 = smul.addr %s406, 4
      %s408 = scalar_lea.vmem %s2, %s407
      %p409 = scmp.lt.s32.totalorder %s23, 0
      %s410 = scalar_select %p409, %s23, 0
      %s411 = smul.addr %s410, 4
      %s412 = scalar_lea.vmem %s3, %s411
      %p413 = scmp.lt.s32.totalorder %s23, 0
      %s414 = scalar_select %p413, %s23, 0
      %s415 = scalar_lea.vmem %s4, %s414
      %p416 = scmp.lt.s32.totalorder %s23, 0
      %s417 = scalar_select %p416, %s23, 0
      %s418 = scalar_lea.vmem %s5, %s417
      %s419 = smul.u32 18, %s24
      %p420 = scmp.lt.s32.totalorder %s22, 1
      %s421 = scalar_select %p420, %s22, 1
      %p422 = scmp.lt.s32.totalorder %s419, 17
      %s423 = scalar_select %p422, %s419, 17
      %p424 = scmp.lt.s32.totalorder %s23, 0
      %s425 = scalar_select %p424, %s23, 0
      %s426 = sadd.s32 %s425, %s423
      %s427 = smul.addr %s421, 18
      %s428 = sadd.s32 %s426, %s427
      %s429 = smul.addr %s428, 8
      %s430 = scalar_lea.vmem %s6, %s429
      %s431 = smul.u32 18, %s24
      %s433 = smul.u32 %s24, 144
      %s434 = sadd.s32 %s433, 144
      %p435 = scmp.le.s32.totalorder %s434, 16
      %p436 = scmp.ge.s32.totalorder %s433, 16
      // Predicated region
      $region45: #{cogvideox_patch_embed.1} parent=43 // pred_check
        %p437 = pneg %p435
      $region46: #{cogvideox_patch_embed.1} parent=43 // pred_check_branch
        %439 = sbr.rel (%p437) target = $region48
      $region47: #{cogvideox_patch_embed.1} parent=43 // pred_region
        %v440 = vld [vmem:[%s387] sm:$0xf]
        %v441 = vld [vmem:[%s387 + $0x4] sm:$0xf]
        %v442 = vld [vmem:[%s387 + $0x8] sm:$0xf]
        %v443 = vld [vmem:[%s387 + $0xc] sm:$0xf]
        %v444 = vld [vmem:[%s387 + $0x10] sm:$0xf]
        %v445 = vld [vmem:[%s387 + $0x14] sm:$0xf]
        %v446 = vld [vmem:[%s387 + $0x18] sm:$0xf]
        %v447 = vld [vmem:[%s387 + $0x1c] sm:$0xf]
        %v448 = vld [vmem:[%s387 + $0x20] sm:$0xf]
        %v449 = vld [vmem:[%s387 + $0x24] sm:$0xf]
        %v450 = vld [vmem:[%s387 + $0x28] sm:$0xf]
        %v451 = vld [vmem:[%s387 + $0x2c] sm:$0xf]
        %v452 = vld [vmem:[%s387 + $0x30] sm:$0xf]
        %v453 = vld [vmem:[%s387 + $0x34] sm:$0xf]
        %v454 = vld [vmem:[%s387 + $0x38] sm:$0xf]
        %v455 = vld [vmem:[%s387 + $0x3c] sm:$0xf]
        %v456 = vld [vmem:[%s387 + $0x40] sm:$0xf]
        %v457 = vld [vmem:[%s387 + $0x44] sm:$0xf]
        %v458 = vld [vmem:[%s408] sm:$0xf]
        %v459 = vld [vmem:[%s408 + $0x4] sm:$0xf]
        %v460 = vld [vmem:[%s408 + $0x8] sm:$0xf]
        %v461 = vld [vmem:[%s408 + $0xc] sm:$0xf]
        %v462 = vld [vmem:[%s408 + $0x10] sm:$0xf]
        %v463 = vld [vmem:[%s408 + $0x14] sm:$0xf]
        %v464 = vld [vmem:[%s408 + $0x18] sm:$0xf]
        %v465 = vld [vmem:[%s408 + $0x1c] sm:$0xf]
        %v466 = vld [vmem:[%s415] sm:$0x1]
        %v468 = vlaneseq
        %v469 = vshrl.u32 %v468, 7
        %v470 = vsub.s32 0, %v469
        %v471 = vrot.slane %v466, %v470
        %v491 = vunpack.c.l.b16 %v440
        %v492 = vunpack.c.l.b16 %v441
        %v493 = vunpack.c.l.b16 %v442
        %v494 = vunpack.c.l.b16 %v443
        %v495 = vunpack.c.l.b16 %v444
        %v496 = vunpack.c.l.b16 %v445
        %v497 = vunpack.c.l.b16 %v446
        %v498 = vunpack.c.l.b16 %v447
        %v499 = vunpack.c.l.b16 %v448
        %v500 = vunpack.c.l.b16 %v449
        %v501 = vunpack.c.l.b16 %v450
        %v502 = vunpack.c.l.b16 %v451
        %v503 = vunpack.c.l.b16 %v452
        %v504 = vunpack.c.l.b16 %v453
        %v505 = vunpack.c.l.b16 %v454
        %v506 = vunpack.c.l.b16 %v455
        %v507 = vunpack.c.l.b16 %v456
        %v508 = vunpack.c.l.b16 %v457
        %v509 = vpack.c.b16 %v492, %v491
        %v510 = vpack.c.b16 %v494, %v493
        %v511 = vpack.c.b16 %v496, %v495
        %v512 = vpack.c.b16 %v498, %v497
        %v513 = vpack.c.b16 %v500, %v499
        %v514 = vpack.c.b16 %v502, %v501
        %v515 = vpack.c.b16 %v504, %v503
        %v516 = vpack.c.b16 %v506, %v505
        %v517 = vpack.c.b16 %v508, %v507
        %v526 = vunpack.c.l.b16 %v458
        %v527 = vunpack.c.l.b16 %v459
        %v528 = vunpack.c.l.b16 %v460
        %v529 = vunpack.c.l.b16 %v461
        %v530 = vunpack.c.l.b16 %v462
        %v531 = vunpack.c.l.b16 %v463
        %v532 = vunpack.c.l.b16 %v464
        %v533 = vunpack.c.l.b16 %v465
        %v534 = vpack.c.b16 %v527, %v526
        %v535 = vpack.c.b16 %v529, %v528
        %v536 = vpack.c.b16 %v531, %v530
        %v537 = vpack.c.b16 %v533, %v532
        %vm542 = vcmask 523264
        %v544 = vsel %vm542, %v509, 0
        %v547 = vsel %vm542, %v510, 0
        %v550 = vsel %vm542, %v511, 0
        %v553 = vsel %vm542, %v512, 0
        %v556 = vsel %vm542, %v513, 0
        %v559 = vsel %vm542, %v514, 0
        %v562 = vsel %vm542, %v515, 0
        %v565 = vsel %vm542, %v516, 0
        %v568 = vsel %vm542, %v517, 0
        %570 = vmatprep.subr.bf16.mxu0 0
        %571 = vmatpush1.bf16.msra.mxu0 %v534
        %572 = vmatprep.subr.bf16.mxu0 0
        %573 = vmatpush1.bf16.msra.mxu0 %v535
        %574 = vmatprep.subr.bf16.mxu0 0
        %575 = vmatpush1.bf16.msra.mxu0 %v536
        %576 = vmatprep.subr.bf16.mxu0 0
        %577 = vmatpush1.bf16.msra.mxu0 %v537
        %578 = vmatprep.subr.bf16.mxu0 0
        %579 = vmatpush1.bf16.msra.mxu0 0
        %580 = vmatprep.subr.bf16.mxu0 0
        %581 = vmatpush1.bf16.msra.mxu0 0
        %582 = vmatprep.subr.bf16.mxu0 0
        %583 = vmatpush1.bf16.msra.mxu0 0
        %584 = vmatprep.subr.bf16.mxu0 0
        %585 = vmatpush1.bf16.msra.mxu0 0
        %586 = vmatprep.subr.bf16.mxu0 0
        %587 = vmatpush1.bf16.msra.mxu0 0
        %588 = vmatprep.subr.bf16.mxu0 0
        %589 = vmatpush1.bf16.msra.mxu0 0
        %590 = vmatprep.subr.bf16.mxu0 0
        %591 = vmatpush1.bf16.msra.mxu0 0
        %592 = vmatprep.subr.bf16.mxu0 0
        %593 = vmatpush1.bf16.msra.mxu0 0
        %594 = vmatprep.subr.bf16.mxu0 0
        %595 = vmatpush1.bf16.msra.mxu0 0
        %596 = vmatprep.subr.bf16.mxu0 0
        %597 = vmatpush1.bf16.msra.mxu0 0
        %598 = vmatprep.subr.bf16.mxu0 0
        %599 = vmatpush1.bf16.msra.mxu0 0
        %600 = vmatprep.subr.bf16.mxu0 0
        %601 = vmatpush1.bf16.msra.mxu0 0
        %602 = vmatprep.mubr.bf16.mxu0 0
        %603 = vmatmul.mubr.bf16.gmra.mrb[0].mxu0 %v544
        %v604 = vpop.f32.mrb[0].mxu0
        %v605 = vadd.f32 %v471, %v604
        %v606 = vpop.f32.mrb[0].mxu0
        %v607 = vpop.f32.mrb[0].mxu0
        %v608 = vadd.f32 %v471, %v607
        %v609 = vpop.f32.mrb[0].mxu0
        %610 = vmatprep.mubr.bf16.mxu0 0
        %611 = vmatmul.mubr.bf16.gmra.mrb[0].mxu0 %v547
        %v612 = vpop.f32.mrb[0].mxu0
        %v613 = vadd.f32 %v471, %v612
        %v614 = vpop.f32.mrb[0].mxu0
        %v615 = vpop.f32.mrb[0].mxu0
        %v616 = vadd.f32 %v471, %v615
        %v617 = vpop.f32.mrb[0].mxu0
        %618 = vmatprep.mubr.bf16.mxu0 0
        %619 = vmatmul.mubr.bf16.gmra.mrb[0].mxu0 %v550
        %v620 = vpop.f32.mrb[0].mxu0
        %v621 = vadd.f32 %v471, %v620
        %v622 = vpop.f32.mrb[0].mxu0
        %v623 = vpop.f32.mrb[0].mxu0
        %v624 = vadd.f32 %v471, %v623
        %v625 = vpop.f32.mrb[0].mxu0
        %626 = vmatprep.mubr.bf16.mxu0 0
        %627 = vmatmul.mubr.bf16.gmra.mrb[0].mxu0 %v553
        %v628 = vpop.f32.mrb[0].mxu0
        %v629 = vadd.f32 %v471, %v628
        %v630 = vpop.f32.mrb[0].mxu0
        %v631 = vpop.f32.mrb[0].mxu0
        %v632 = vadd.f32 %v471, %v631
        %v633 = vpop.f32.mrb[0].mxu0
        %634 = vmatprep.mubr.bf16.mxu0 0
        %635 = vmatmul.mubr.bf16.gmra.mrb[0].mxu0 %v556
        %v636 = vpop.f32.mrb[0].mxu0
        %v637 = vadd.f32 %v471, %v636
        %v638 = vpop.f32.mrb[0].mxu0
        %v639 = vpop.f32.mrb[0].mxu0
        %v640 = vadd.f32 %v471, %v639
        %v641 = vpop.f32.mrb[0].mxu0
        %642 = vmatprep.mubr.bf16.mxu0 0
        %643 = vmatmul.mubr.bf16.gmra.mrb[0].mxu0 %v559
        %v644 = vpop.f32.mrb[0].mxu0
        %v645 = vadd.f32 %v471, %v644
        %v646 = vpop.f32.mrb[0].mxu0
        %v647 = vpop.f32.mrb[0].mxu0
        %v648 = vadd.f32 %v471, %v647
        %v649 = vpop.f32.mrb[0].mxu0
        %650 = vmatprep.mubr.bf16.mxu0 0
        %651 = vmatmul.mubr.bf16.gmra.mrb[0].mxu0 %v562
        %v652 = vpop.f32.mrb[0].mxu0
        %v653 = vadd.f32 %v471, %v652
        %v654 = vpop.f32.mrb[0].mxu0
        %v655 = vpop.f32.mrb[0].mxu0
        %v656 = vadd.f32 %v471, %v655
        %v657 = vpop.f32.mrb[0].mxu0
        %658 = vmatprep.mubr.bf16.mxu0 0
        %659 = vmatmul.mubr.bf16.gmra.mrb[0].mxu0 %v565
        %v660 = vpop.f32.mrb[0].mxu0
        %v661 = vadd.f32 %v471, %v660
        %v662 = vpop.f32.mrb[0].mxu0
        %v663 = vpop.f32.mrb[0].mxu0
        %v664 = vadd.f32 %v471, %v663
        %v665 = vpop.f32.mrb[0].mxu0
        %666 = vmatprep.mubr.bf16.mxu0 0
        %667 = vmatmul.mubr.bf16.gmra.mrb[0].mxu0 %v568
        %v668 = vpop.f32.mrb[0].mxu0
        %v669 = vadd.f32 %v471, %v668
        %v670 = vpop.f32.mrb[0].mxu0
        %v671 = vpop.f32.mrb[0].mxu0
        %v672 = vadd.f32 %v471, %v671
        %v673 = vpop.f32.mrb[0].mxu0
        %674 = vdwg.mxu0
        %vm675 = vcmask 261120
        %676 = vst.msk [vmem:[%s430] sm:$0xff] %vm675, %v605
        %677 = vst.msk [vmem:[%s430 + $0x8] sm:$0xff] %vm675, %v608
        %678 = vst.msk [vmem:[%s430 + $0x10] sm:$0xff] %vm675, %v613
        %679 = vst.msk [vmem:[%s430 + $0x18] sm:$0xff] %vm675, %v616
        %680 = vst.msk [vmem:[%s430 + $0x20] sm:$0xff] %vm675, %v621
        %681 = vst.msk [vmem:[%s430 + $0x28] sm:$0xff] %vm675, %v624
        %682 = vst.msk [vmem:[%s430 + $0x30] sm:$0xff] %vm675, %v629
        %683 = vst.msk [vmem:[%s430 + $0x38] sm:$0xff] %vm675, %v632
        %684 = vst.msk [vmem:[%s430 + $0x40] sm:$0xff] %vm675, %v637
        %685 = vst.msk [vmem:[%s430 + $0x48] sm:$0xff] %vm675, %v640
        %686 = vst.msk [vmem:[%s430 + $0x50] sm:$0xff] %vm675, %v645
        %687 = vst.msk [vmem:[%s430 + $0x58] sm:$0xff] %vm675, %v648
        %688 = vst.msk [vmem:[%s430 + $0x60] sm:$0xff] %vm675, %v653
        %689 = vst.msk [vmem:[%s430 + $0x68] sm:$0xff] %vm675, %v656
        %690 = vst.msk [vmem:[%s430 + $0x70] sm:$0xff] %vm675, %v661
        %691 = vst.msk [vmem:[%s430 + $0x78] sm:$0xff] %vm675, %v664
        %692 = vst.msk [vmem:[%s430 + $0x80] sm:$0xff] %vm675, %v669
        %693 = vst.msk [vmem:[%s430 + $0x88] sm:$0xff] %vm675, %v672
      $region48: #{cogvideox_patch_embed.1} parent=43 // pred_fallthru
        _
      // Predicated region
      $region49: #{cogvideox_patch_embed.1} parent=43 // pred_check
        %p694 = pneg %p436
      $region50: #{cogvideox_patch_embed.1} parent=43 // pred_check_branch
        %696 = sbr.rel (%p694) target = $region52
      $region51: #{cogvideox_patch_embed.1} parent=43 // pred_region
        %v697 = vld [vmem:[%s401] sm:$0xf]
        %v698 = vld [vmem:[%s401 + $0x4] sm:$0xf]
        %v699 = vld [vmem:[%s401 + $0x8] sm:$0xf]
        %v700 = vld [vmem:[%s401 + $0xc] sm:$0xf]
        %v701 = vld [vmem:[%s401 + $0x10] sm:$0xf]
        %v702 = vld [vmem:[%s401 + $0x14] sm:$0xf]
        %v703 = vld [vmem:[%s401 + $0x18] sm:$0xf]
        %v704 = vld [vmem:[%s401 + $0x1c] sm:$0xf]
        %v705 = vld [vmem:[%s401 + $0x20] sm:$0xf]
        %v706 = vld [vmem:[%s401 + $0x24] sm:$0xf]
        %v707 = vld [vmem:[%s401 + $0x28] sm:$0xf]
        %v708 = vld [vmem:[%s401 + $0x2c] sm:$0xf]
        %v709 = vld [vmem:[%s401 + $0x30] sm:$0xf]
        %v710 = vld [vmem:[%s401 + $0x34] sm:$0xf]
        %v711 = vld [vmem:[%s401 + $0x38] sm:$0xf]
        %v712 = vld [vmem:[%s401 + $0x3c] sm:$0xf]
        %v713 = vld [vmem:[%s401 + $0x40] sm:$0xf]
        %v714 = vld [vmem:[%s401 + $0x44] sm:$0xf]
        %v715 = vld [vmem:[%s412] sm:$0xf]
        %v716 = vld [vmem:[%s412 + $0x4] sm:$0xf]
        %v717 = vld [vmem:[%s418] sm:$0x1]
        %v719 = vlaneseq
        %v720 = vshrl.u32 %v719, 7
        %v721 = vsub.s32 0, %v720
        %v722 = vrot.slane %v717, %v721
        %v742 = vunpack.c.l.b16 %v697
        %v743 = vunpack.c.l.b16 %v698
        %v744 = vunpack.c.l.b16 %v699
        %v745 = vunpack.c.l.b16 %v700
        %v746 = vunpack.c.l.b16 %v701
        %v747 = vunpack.c.l.b16 %v702
        %v748 = vunpack.c.l.b16 %v703
        %v749 = vunpack.c.l.b16 %v704
        %v750 = vunpack.c.l.b16 %v705
        %v751 = vunpack.c.l.b16 %v706
        %v752 = vunpack.c.l.b16 %v707
        %v753 = vunpack.c.l.b16 %v708
        %v754 = vunpack.c.l.b16 %v709
        %v755 = vunpack.c.l.b16 %v710
        %v756 = vunpack.c.l.b16 %v711
        %v757 = vunpack.c.l.b16 %v712
        %v758 = vunpack.c.l.b16 %v713
        %v759 = vunpack.c.l.b16 %v714
        %v760 = vpack.c.b16 %v743, %v742
        %v761 = vpack.c.b16 %v745, %v744
        %v762 = vpack.c.b16 %v747, %v746
        %v763 = vpack.c.b16 %v749, %v748
        %v764 = vpack.c.b16 %v751, %v750
        %v765 = vpack.c.b16 %v753, %v752
        %v766 = vpack.c.b16 %v755, %v754
        %v767 = vpack.c.b16 %v757, %v756
        %v768 = vpack.c.b16 %v759, %v758
        %v771 = vunpack.c.l.b16 %v715
        %v772 = vunpack.c.l.b16 %v716
        %v773 = vpack.c.b16 %v772, %v771
        %vm775 = vcmask 130048
        %v777 = vsel %vm775, %v760, 0
        %v780 = vsel %vm775, %v761, 0
        %v783 = vsel %vm775, %v762, 0
        %v786 = vsel %vm775, %v763, 0
        %v789 = vsel %vm775, %v764, 0
        %v792 = vsel %vm775, %v765, 0
        %v795 = vsel %vm775, %v766, 0
        %v798 = vsel %vm775, %v767, 0
        %v801 = vsel %vm775, %v768, 0
        %803 = vmatprep.subr.bf16.mxu0 0
        %804 = vmatpush1.bf16.msra.mxu0 %v773
        %805 = vmatprep.subr.bf16.mxu0 0
        %806 = vmatpush1.bf16.msra.mxu0 0
        %807 = vmatprep.subr.bf16.mxu0 0
        %808 = vmatpush1.bf16.msra.mxu0 0
        %809 = vmatprep.subr.bf16.mxu0 0
        %810 = vmatpush1.bf16.msra.mxu0 0
        %811 = vmatprep.subr.bf16.mxu0 0
        %812 = vmatpush1.bf16.msra.mxu0 0
        %813 = vmatprep.subr.bf16.mxu0 0
        %814 = vmatpush1.bf16.msra.mxu0 0
        %815 = vmatprep.subr.bf16.mxu0 0
        %816 = vmatpush1.bf16.msra.mxu0 0
        %817 = vmatprep.subr.bf16.mxu0 0
        %818 = vmatpush1.bf16.msra.mxu0 0
        %819 = vmatprep.subr.bf16.mxu0 0
        %820 = vmatpush1.bf16.msra.mxu0 0
        %821 = vmatprep.subr.bf16.mxu0 0
        %822 = vmatpush1.bf16.msra.mxu0 0
        %823 = vmatprep.subr.bf16.mxu0 0
        %824 = vmatpush1.bf16.msra.mxu0 0
        %825 = vmatprep.subr.bf16.mxu0 0
        %826 = vmatpush1.bf16.msra.mxu0 0
        %827 = vmatprep.subr.bf16.mxu0 0
        %828 = vmatpush1.bf16.msra.mxu0 0
        %829 = vmatprep.subr.bf16.mxu0 0
        %830 = vmatpush1.bf16.msra.mxu0 0
        %831 = vmatprep.subr.bf16.mxu0 0
        %832 = vmatpush1.bf16.msra.mxu0 0
        %833 = vmatprep.subr.bf16.mxu0 0
        %834 = vmatpush1.bf16.msra.mxu0 0
        %835 = vmatprep.mubr.bf16.mxu0 0
        %836 = vmatmul.mubr.bf16.gmra.mrb[0].mxu0 %v777
        %v837 = vpop.f32.mrb[0].mxu0
        %v838 = vadd.f32 %v722, %v837
        %v839 = vpop.f32.mrb[0].mxu0
        %v840 = vpop.f32.mrb[0].mxu0
        %v841 = vadd.f32 %v722, %v840
        %v842 = vpop.f32.mrb[0].mxu0
        %843 = vmatprep.mubr.bf16.mxu0 0
        %844 = vmatmul.mubr.bf16.gmra.mrb[0].mxu0 %v780
        %v845 = vpop.f32.mrb[0].mxu0
        %v846 = vadd.f32 %v722, %v845
        %v847 = vpop.f32.mrb[0].mxu0
        %v848 = vpop.f32.mrb[0].mxu0
        %v849 = vadd.f32 %v722, %v848
        %v850 = vpop.f32.mrb[0].mxu0
        %851 = vmatprep.mubr.bf16.mxu0 0
        %852 = vmatmul.mubr.bf16.gmra.mrb[0].mxu0 %v783
        %v853 = vpop.f32.mrb[0].mxu0
        %v854 = vadd.f32 %v722, %v853
        %v855 = vpop.f32.mrb[0].mxu0
        %v856 = vpop.f32.mrb[0].mxu0
        %v857 = vadd.f32 %v722, %v856
        %v858 = vpop.f32.mrb[0].mxu0
        %859 = vmatprep.mubr.bf16.mxu0 0
        %860 = vmatmul.mubr.bf16.gmra.mrb[0].mxu0 %v786
        %v861 = vpop.f32.mrb[0].mxu0
        %v862 = vadd.f32 %v722, %v861
        %v863 = vpop.f32.mrb[0].mxu0
        %v864 = vpop.f32.mrb[0].mxu0
        %v865 = vadd.f32 %v722, %v864
        %v866 = vpop.f32.mrb[0].mxu0
        %867 = vmatprep.mubr.bf16.mxu0 0
        %868 = vmatmul.mubr.bf16.gmra.mrb[0].mxu0 %v789
        %v869 = vpop.f32.mrb[0].mxu0
        %v870 = vadd.f32 %v722, %v869
        %v871 = vpop.f32.mrb[0].mxu0
        %v872 = vpop.f32.mrb[0].mxu0
        %v873 = vadd.f32 %v722, %v872
        %v874 = vpop.f32.mrb[0].mxu0
        %875 = vmatprep.mubr.bf16.mxu0 0
        %876 = vmatmul.mubr.bf16.gmra.mrb[0].mxu0 %v792
        %v877 = vpop.f32.mrb[0].mxu0
        %v878 = vadd.f32 %v722, %v877
        %v879 = vpop.f32.mrb[0].mxu0
        %v880 = vpop.f32.mrb[0].mxu0
        %v881 = vadd.f32 %v722, %v880
        %v882 = vpop.f32.mrb[0].mxu0
        %883 = vmatprep.mubr.bf16.mxu0 0
        %884 = vmatmul.mubr.bf16.gmra.mrb[0].mxu0 %v795
        %v885 = vpop.f32.mrb[0].mxu0
        %v886 = vadd.f32 %v722, %v885
        %v887 = vpop.f32.mrb[0].mxu0
        %v888 = vpop.f32.mrb[0].mxu0
        %v889 = vadd.f32 %v722, %v888
        %v890 = vpop.f32.mrb[0].mxu0
        %891 = vmatprep.mubr.bf16.mxu0 0
        %892 = vmatmul.mubr.bf16.gmra.mrb[0].mxu0 %v798
        %v893 = vpop.f32.mrb[0].mxu0
        %v894 = vadd.f32 %v722, %v893
        %v895 = vpop.f32.mrb[0].mxu0
        %v896 = vpop.f32.mrb[0].mxu0
        %v897 = vadd.f32 %v722, %v896
        %v898 = vpop.f32.mrb[0].mxu0
        %899 = vmatprep.mubr.bf16.mxu0 0
        %900 = vmatmul.mubr.bf16.gmra.mrb[0].mxu0 %v801
        %v901 = vpop.f32.mrb[0].mxu0
        %v902 = vadd.f32 %v722, %v901
        %v903 = vpop.f32.mrb[0].mxu0
        %v904 = vpop.f32.mrb[0].mxu0
        %v905 = vadd.f32 %v722, %v904
        %v906 = vpop.f32.mrb[0].mxu0
        %907 = vdwg.mxu0
        %vm908 = vcmask 261120
        %909 = vst.msk [vmem:[%s430] sm:$0xff] %vm908, %v838
        %910 = vst.msk [vmem:[%s430 + $0x8] sm:$0xff] %vm908, %v841
        %911 = vst.msk [vmem:[%s430 + $0x10] sm:$0xff] %vm908, %v846
        %912 = vst.msk [vmem:[%s430 + $0x18] sm:$0xff] %vm908, %v849
        %913 = vst.msk [vmem:[%s430 + $0x20] sm:$0xff] %vm908, %v854
        %914 = vst.msk [vmem:[%s430 + $0x28] sm:$0xff] %vm908, %v857
        %915 = vst.msk [vmem:[%s430 + $0x30] sm:$0xff] %vm908, %v862
        %916 = vst.msk [vmem:[%s430 + $0x38] sm:$0xff] %vm908, %v865
        %917 = vst.msk [vmem:[%s430 + $0x40] sm:$0xff] %vm908, %v870
        %918 = vst.msk [vmem:[%s430 + $0x48] sm:$0xff] %vm908, %v873
        %919 = vst.msk [vmem:[%s430 + $0x50] sm:$0xff] %vm908, %v878
        %920 = vst.msk [vmem:[%s430 + $0x58] sm:$0xff] %vm908, %v881
        %921 = vst.msk [vmem:[%s430 + $0x60] sm:$0xff] %vm908, %v886
        %922 = vst.msk [vmem:[%s430 + $0x68] sm:$0xff] %vm908, %v889
        %923 = vst.msk [vmem:[%s430 + $0x70] sm:$0xff] %vm908, %v894
        %924 = vst.msk [vmem:[%s430 + $0x78] sm:$0xff] %vm908, %v897
        %925 = vst.msk [vmem:[%s430 + $0x80] sm:$0xff] %vm908, %v902
        %926 = vst.msk [vmem:[%s430 + $0x88] sm:$0xff] %vm908, %v905
      $region52: #{cogvideox_patch_embed.1} parent=43 // pred_fallthru
        _
      %p927 = scmp.gt.s32.totalorder %s434, 16
      %p928 = scmp.lt.s32.totalorder %s433, 16
      %p929 = pnand %p927, %p928
      %p930 = pneg %p929
      // Predicated region
      $region53: #{cogvideox_patch_embed.1} parent=43 // pred_check
        _
      $region54: #{cogvideox_patch_embed.1} parent=43 // pred_check_branch
        %932 = sbr.rel (%p929) target = $region56
      $region55: #{cogvideox_patch_embed.1} parent=43 // pred_region
        %v933 = vlaneseq
        %v934 = vshrl.u32 %v933, 7
        %v935 = vadd.s32 %v934, 8
        %v936 = vadd.s32 %v934, 16
        %v937 = vadd.s32 %v934, 24
        %v938 = vadd.s32 %v934, 32
        %v939 = vadd.s32 %v934, 40
        %v940 = vadd.s32 %v934, 48
        %v941 = vadd.s32 %v934, 56
        %v942 = vadd.s32 %v934, 64
        %v943 = vadd.s32 %v934, 72
        %v944 = vadd.s32 %v934, 80
        %v945 = vadd.s32 %v934, 88
        %v946 = vadd.s32 %v934, 96
        %v947 = vadd.s32 %v934, 104
        %v948 = vadd.s32 %v934, 112
        %v949 = vadd.s32 %v934, 120
        %v950 = vadd.s32 %v934, 128
        %v951 = vadd.s32 %v934, 136
        %v952 = vstv %s433
        %v953 = vadd.s32 %v952, %v934
        %v954 = vadd.s32 %v952, %v935
        %v955 = vadd.s32 %v952, %v936
        %v956 = vadd.s32 %v952, %v937
        %v957 = vadd.s32 %v952, %v938
        %v958 = vadd.s32 %v952, %v939
        %v959 = vadd.s32 %v952, %v940
        %v960 = vadd.s32 %v952, %v941
        %v961 = vadd.s32 %v952, %v942
        %v962 = vadd.s32 %v952, %v943
        %v963 = vadd.s32 %v952, %v944
        %v964 = vadd.s32 %v952, %v945
        %v965 = vadd.s32 %v952, %v946
        %v966 = vadd.s32 %v952, %v947
        %v967 = vadd.s32 %v952, %v948
        %v968 = vadd.s32 %v952, %v949
        %v969 = vadd.s32 %v952, %v950
        %v970 = vadd.s32 %v952, %v951
        %vm971 = vcmp.lt.s32.totalorder %v953, 16
        %vm972 = vcmp.lt.s32.totalorder %v954, 16
        %vm973 = vcmp.lt.s32.totalorder %v955, 16
        %vm974 = vcmp.lt.s32.totalorder %v956, 16
        %vm975 = vcmp.lt.s32.totalorder %v957, 16
        %vm976 = vcmp.lt.s32.totalorder %v958, 16
        %vm977 = vcmp.lt.s32.totalorder %v959, 16
        %vm978 = vcmp.lt.s32.totalorder %v960, 16
        %vm979 = vcmp.lt.s32.totalorder %v961, 16
        %vm980 = vcmp.lt.s32.totalorder %v962, 16
        %vm981 = vcmp.lt.s32.totalorder %v963, 16
        %vm982 = vcmp.lt.s32.totalorder %v964, 16
        %vm983 = vcmp.lt.s32.totalorder %v965, 16
        %vm984 = vcmp.lt.s32.totalorder %v966, 16
        %vm985 = vcmp.lt.s32.totalorder %v967, 16
        %vm986 = vcmp.lt.s32.totalorder %v968, 16
        %vm987 = vcmp.lt.s32.totalorder %v969, 16
        %vm988 = vcmp.lt.s32.totalorder %v970, 16
        %v989 = vld [vmem:[%s387] sm:$0xf]
        %v990 = vld [vmem:[%s387 + $0x4] sm:$0xf]
        %v991 = vld [vmem:[%s387 + $0x8] sm:$0xf]
        %v992 = vld [vmem:[%s387 + $0xc] sm:$0xf]
        %v993 = vld [vmem:[%s387 + $0x10] sm:$0xf]
        %v994 = vld [vmem:[%s387 + $0x14] sm:$0xf]
        %v995 = vld [vmem:[%s387 + $0x18] sm:$0xf]
        %v996 = vld [vmem:[%s387 + $0x1c] sm:$0xf]
        %v997 = vld [vmem:[%s387 + $0x20] sm:$0xf]
        %v998 = vld [vmem:[%s387 + $0x24] sm:$0xf]
        %v999 = vld [vmem:[%s387 + $0x28] sm:$0xf]
        %v1000 = vld [vmem:[%s387 + $0x2c] sm:$0xf]
        %v1001 = vld [vmem:[%s387 + $0x30] sm:$0xf]
        %v1002 = vld [vmem:[%s387 + $0x34] sm:$0xf]
        %v1003 = vld [vmem:[%s387 + $0x38] sm:$0xf]
        %v1004 = vld [vmem:[%s387 + $0x3c] sm:$0xf]
        %v1005 = vld [vmem:[%s387 + $0x40] sm:$0xf]
        %v1006 = vld [vmem:[%s387 + $0x44] sm:$0xf]
        %v1007 = vld [vmem:[%s408] sm:$0xf]
        %v1008 = vld [vmem:[%s408 + $0x4] sm:$0xf]
        %v1009 = vld [vmem:[%s408 + $0x8] sm:$0xf]
        %v1010 = vld [vmem:[%s408 + $0xc] sm:$0xf]
        %v1011 = vld [vmem:[%s408 + $0x10] sm:$0xf]
        %v1012 = vld [vmem:[%s408 + $0x14] sm:$0xf]
        %v1013 = vld [vmem:[%s408 + $0x18] sm:$0xf]
        %v1014 = vld [vmem:[%s408 + $0x1c] sm:$0xf]
        %v1015 = vld [vmem:[%s415] sm:$0x1]
        %v1017 = vlaneseq
        %v1018 = vshrl.u32 %v1017, 7
        %v1019 = vsub.s32 0, %v1018
        %v1020 = vrot.slane %v1015, %v1019
        %v1040 = vunpack.c.l.b16 %v989
        %v1041 = vunpack.c.l.b16 %v990
        %v1042 = vunpack.c.l.b16 %v991
        %v1043 = vunpack.c.l.b16 %v992
        %v1044 = vunpack.c.l.b16 %v993
        %v1045 = vunpack.c.l.b16 %v994
        %v1046 = vunpack.c.l.b16 %v995
        %v1047 = vunpack.c.l.b16 %v996
        %v1048 = vunpack.c.l.b16 %v997
        %v1049 = vunpack.c.l.b16 %v998
        %v1050 = vunpack.c.l.b16 %v999
        %v1051 = vunpack.c.l.b16 %v1000
        %v1052 = vunpack.c.l.b16 %v1001
        %v1053 = vunpack.c.l.b16 %v1002
        %v1054 = vunpack.c.l.b16 %v1003
        %v1055 = vunpack.c.l.b16 %v1004
        %v1056 = vunpack.c.l.b16 %v1005
        %v1057 = vunpack.c.l.b16 %v1006
        %v1058 = vpack.c.b16 %v1041, %v1040
        %v1059 = vpack.c.b16 %v1043, %v1042
        %v1060 = vpack.c.b16 %v1045, %v1044
        %v1061 = vpack.c.b16 %v1047, %v1046
        %v1062 = vpack.c.b16 %v1049, %v1048
        %v1063 = vpack.c.b16 %v1051, %v1050
        %v1064 = vpack.c.b16 %v1053, %v1052
        %v1065 = vpack.c.b16 %v1055, %v1054
        %v1066 = vpack.c.b16 %v1057, %v1056
        %v1075 = vunpack.c.l.b16 %v1007
        %v1076 = vunpack.c.l.b16 %v1008
        %v1077 = vunpack.c.l.b16 %v1009
        %v1078 = vunpack.c.l.b16 %v1010
        %v1079 = vunpack.c.l.b16 %v1011
        %v1080 = vunpack.c.l.b16 %v1012
        %v1081 = vunpack.c.l.b16 %v1013
        %v1082 = vunpack.c.l.b16 %v1014
        %v1083 = vpack.c.b16 %v1076, %v1075
        %v1084 = vpack.c.b16 %v1078, %v1077
        %v1085 = vpack.c.b16 %v1080, %v1079
        %v1086 = vpack.c.b16 %v1082, %v1081
        %vm1091 = vcmask 523264
        %v1093 = vsel %vm1091, %v1058, 0
        %v1096 = vsel %vm1091, %v1059, 0
        %v1099 = vsel %vm1091, %v1060, 0
        %v1102 = vsel %vm1091, %v1061, 0
        %v1105 = vsel %vm1091, %v1062, 0
        %v1108 = vsel %vm1091, %v1063, 0
        %v1111 = vsel %vm1091, %v1064, 0
        %v1114 = vsel %vm1091, %v1065, 0
        %v1117 = vsel %vm1091, %v1066, 0
        %1119 = vmatprep.subr.bf16.mxu0 0
        %1120 = vmatpush1.bf16.msra.mxu0 %v1083
        %1121 = vmatprep.subr.bf16.mxu0 0
        %1122 = vmatpush1.bf16.msra.mxu0 %v1084
        %1123 = vmatprep.subr.bf16.mxu0 0
        %1124 = vmatpush1.bf16.msra.mxu0 %v1085
        %1125 = vmatprep.subr.bf16.mxu0 0
        %1126 = vmatpush1.bf16.msra.mxu0 %v1086
        %1127 = vmatprep.subr.bf16.mxu0 0
        %1128 = vmatpush1.bf16.msra.mxu0 0
        %1129 = vmatprep.subr.bf16.mxu0 0
        %1130 = vmatpush1.bf16.msra.mxu0 0
        %1131 = vmatprep.subr.bf16.mxu0 0
        %1132 = vmatpush1.bf16.msra.mxu0 0
        %1133 = vmatprep.subr.bf16.mxu0 0
        %1134 = vmatpush1.bf16.msra.mxu0 0
        %1135 = vmatprep.subr.bf16.mxu0 0
        %1136 = vmatpush1.bf16.msra.mxu0 0
        %1137 = vmatprep.subr.bf16.mxu0 0
        %1138 = vmatpush1.bf16.msra.mxu0 0
        %1139 = vmatprep.subr.bf16.mxu0 0
        %1140 = vmatpush1.bf16.msra.mxu0 0
        %1141 = vmatprep.subr.bf16.mxu0 0
        %1142 = vmatpush1.bf16.msra.mxu0 0
        %1143 = vmatprep.subr.bf16.mxu0 0
        %1144 = vmatpush1.bf16.msra.mxu0 0
        %1145 = vmatprep.subr.bf16.mxu0 0
        %1146 = vmatpush1.bf16.msra.mxu0 0
        %1147 = vmatprep.subr.bf16.mxu0 0
        %1148 = vmatpush1.bf16.msra.mxu0 0
        %1149 = vmatprep.subr.bf16.mxu0 0
        %1150 = vmatpush1.bf16.msra.mxu0 0
        %1151 = vmatprep.mubr.bf16.mxu0 0
        %1152 = vmatmul.mubr.bf16.gmra.mrb[0].mxu0 %v1093
        %v1153 = vpop.f32.mrb[0].mxu0
        %v1154 = vadd.f32 %v1020, %v1153
        %v1155 = vpop.f32.mrb[0].mxu0
        %v1156 = vpop.f32.mrb[0].mxu0
        %v1157 = vadd.f32 %v1020, %v1156
        %v1158 = vpop.f32.mrb[0].mxu0
        %1159 = vmatprep.mubr.bf16.mxu0 0
        %1160 = vmatmul.mubr.bf16.gmra.mrb[0].mxu0 %v1096
        %v1161 = vpop.f32.mrb[0].mxu0
        %v1162 = vadd.f32 %v1020, %v1161
        %v1163 = vpop.f32.mrb[0].mxu0
        %v1164 = vpop.f32.mrb[0].mxu0
        %v1165 = vadd.f32 %v1020, %v1164
        %v1166 = vpop.f32.mrb[0].mxu0
        %1167 = vmatprep.mubr.bf16.mxu0 0
        %1168 = vmatmul.mubr.bf16.gmra.mrb[0].mxu0 %v1099
        %v1169 = vpop.f32.mrb[0].mxu0
        %v1170 = vadd.f32 %v1020, %v1169
        %v1171 = vpop.f32.mrb[0].mxu0
        %v1172 = vpop.f32.mrb[0].mxu0
        %v1173 = vadd.f32 %v1020, %v1172
        %v1174 = vpop.f32.mrb[0].mxu0
        %1175 = vmatprep.mubr.bf16.mxu0 0
        %1176 = vmatmul.mubr.bf16.gmra.mrb[0].mxu0 %v1102
        %v1177 = vpop.f32.mrb[0].mxu0
        %v1178 = vadd.f32 %v1020, %v1177
        %v1179 = vpop.f32.mrb[0].mxu0
        %v1180 = vpop.f32.mrb[0].mxu0
        %v1181 = vadd.f32 %v1020, %v1180
        %v1182 = vpop.f32.mrb[0].mxu0
        %1183 = vmatprep.mubr.bf16.mxu0 0
        %1184 = vmatmul.mubr.bf16.gmra.mrb[0].mxu0 %v1105
        %v1185 = vpop.f32.mrb[0].mxu0
        %v1186 = vadd.f32 %v1020, %v1185
        %v1187 = vpop.f32.mrb[0].mxu0
        %v1188 = vpop.f32.mrb[0].mxu0
        %v1189 = vadd.f32 %v1020, %v1188
        %v1190 = vpop.f32.mrb[0].mxu0
        %1191 = vmatprep.mubr.bf16.mxu0 0
        %1192 = vmatmul.mubr.bf16.gmra.mrb[0].mxu0 %v1108
        %v1193 = vpop.f32.mrb[0].mxu0
        %v1194 = vadd.f32 %v1020, %v1193
        %v1195 = vpop.f32.mrb[0].mxu0
        %v1196 = vpop.f32.mrb[0].mxu0
        %v1197 = vadd.f32 %v1020, %v1196
        %v1198 = vpop.f32.mrb[0].mxu0
        %1199 = vmatprep.mubr.bf16.mxu0 0
        %1200 = vmatmul.mubr.bf16.gmra.mrb[0].mxu0 %v1111
        %v1201 = vpop.f32.mrb[0].mxu0
        %v1202 = vadd.f32 %v1020, %v1201
        %v1203 = vpop.f32.mrb[0].mxu0
        %v1204 = vpop.f32.mrb[0].mxu0
        %v1205 = vadd.f32 %v1020, %v1204
        %v1206 = vpop.f32.mrb[0].mxu0
        %1207 = vmatprep.mubr.bf16.mxu0 0
        %1208 = vmatmul.mubr.bf16.gmra.mrb[0].mxu0 %v1114
        %v1209 = vpop.f32.mrb[0].mxu0
        %v1210 = vadd.f32 %v1020, %v1209
        %v1211 = vpop.f32.mrb[0].mxu0
        %v1212 = vpop.f32.mrb[0].mxu0
        %v1213 = vadd.f32 %v1020, %v1212
        %v1214 = vpop.f32.mrb[0].mxu0
        %1215 = vmatprep.mubr.bf16.mxu0 0
        %1216 = vmatmul.mubr.bf16.gmra.mrb[0].mxu0 %v1117
        %v1217 = vpop.f32.mrb[0].mxu0
        %v1218 = vadd.f32 %v1020, %v1217
        %v1219 = vpop.f32.mrb[0].mxu0
        %v1220 = vpop.f32.mrb[0].mxu0
        %v1221 = vadd.f32 %v1020, %v1220
        %v1222 = vpop.f32.mrb[0].mxu0
        %1223 = vdwg.mxu0
        %v1224 = vld [vmem:[%s401] sm:$0xf]
        %v1225 = vld [vmem:[%s401 + $0x4] sm:$0xf]
        %v1226 = vld [vmem:[%s401 + $0x8] sm:$0xf]
        %v1227 = vld [vmem:[%s401 + $0xc] sm:$0xf]
        %v1228 = vld [vmem:[%s401 + $0x10] sm:$0xf]
        %v1229 = vld [vmem:[%s401 + $0x14] sm:$0xf]
        %v1230 = vld [vmem:[%s401 + $0x18] sm:$0xf]
        %v1231 = vld [vmem:[%s401 + $0x1c] sm:$0xf]
        %v1232 = vld [vmem:[%s401 + $0x20] sm:$0xf]
        %v1233 = vld [vmem:[%s401 + $0x24] sm:$0xf]
        %v1234 = vld [vmem:[%s401 + $0x28] sm:$0xf]
        %v1235 = vld [vmem:[%s401 + $0x2c] sm:$0xf]
        %v1236 = vld [vmem:[%s401 + $0x30] sm:$0xf]
        %v1237 = vld [vmem:[%s401 + $0x34] sm:$0xf]
        %v1238 = vld [vmem:[%s401 + $0x38] sm:$0xf]
        %v1239 = vld [vmem:[%s401 + $0x3c] sm:$0xf]
        %v1240 = vld [vmem:[%s401 + $0x40] sm:$0xf]
        %v1241 = vld [vmem:[%s401 + $0x44] sm:$0xf]
        %v1242 = vld [vmem:[%s412] sm:$0xf]
        %v1243 = vld [vmem:[%s412 + $0x4] sm:$0xf]
        %v1244 = vld [vmem:[%s418] sm:$0x1]
        %v1246 = vlaneseq
        %v1247 = vshrl.u32 %v1246, 7
        %v1248 = vsub.s32 0, %v1247
        %v1249 = vrot.slane %v1244, %v1248
        %v1269 = vunpack.c.l.b16 %v1224
        %v1270 = vunpack.c.l.b16 %v1225
        %v1271 = vunpack.c.l.b16 %v1226
        %v1272 = vunpack.c.l.b16 %v1227
        %v1273 = vunpack.c.l.b16 %v1228
        %v1274 = vunpack.c.l.b16 %v1229
        %v1275 = vunpack.c.l.b16 %v1230
        %v1276 = vunpack.c.l.b16 %v1231
        %v1277 = vunpack.c.l.b16 %v1232
        %v1278 = vunpack.c.l.b16 %v1233
        %v1279 = vunpack.c.l.b16 %v1234
        %v1280 = vunpack.c.l.b16 %v1235
        %v1281 = vunpack.c.l.b16 %v1236
        %v1282 = vunpack.c.l.b16 %v1237
        %v1283 = vunpack.c.l.b16 %v1238
        %v1284 = vunpack.c.l.b16 %v1239
        %v1285 = vunpack.c.l.b16 %v1240
        %v1286 = vunpack.c.l.b16 %v1241
        %v1287 = vpack.c.b16 %v1270, %v1269
        %v1288 = vpack.c.b16 %v1272, %v1271
        %v1289 = vpack.c.b16 %v1274, %v1273
        %v1290 = vpack.c.b16 %v1276, %v1275
        %v1291 = vpack.c.b16 %v1278, %v1277
        %v1292 = vpack.c.b16 %v1280, %v1279
        %v1293 = vpack.c.b16 %v1282, %v1281
        %v1294 = vpack.c.b16 %v1284, %v1283
        %v1295 = vpack.c.b16 %v1286, %v1285
        %v1298 = vunpack.c.l.b16 %v1242
        %v1299 = vunpack.c.l.b16 %v1243
        %v1300 = vpack.c.b16 %v1299, %v1298
        %vm1302 = vcmask 130048
        %v1304 = vsel %vm1302, %v1287, 0
        %v1307 = vsel %vm1302, %v1288, 0
        %v1310 = vsel %vm1302, %v1289, 0
        %v1313 = vsel %vm1302, %v1290, 0
        %v1316 = vsel %vm1302, %v1291, 0
        %v1319 = vsel %vm1302, %v1292, 0
        %v1322 = vsel %vm1302, %v1293, 0
        %v1325 = vsel %vm1302, %v1294, 0
        %v1328 = vsel %vm1302, %v1295, 0
        %1330 = vmatprep.subr.bf16.mxu0 0
        %1331 = vmatpush1.bf16.msra.mxu0 %v1300
        %1332 = vmatprep.subr.bf16.mxu0 0
        %1333 = vmatpush1.bf16.msra.mxu0 0
        %1334 = vmatprep.subr.bf16.mxu0 0
        %1335 = vmatpush1.bf16.msra.mxu0 0
        %1336 = vmatprep.subr.bf16.mxu0 0
        %1337 = vmatpush1.bf16.msra.mxu0 0
        %1338 = vmatprep.subr.bf16.mxu0 0
        %1339 = vmatpush1.bf16.msra.mxu0 0
        %1340 = vmatprep.subr.bf16.mxu0 0
        %1341 = vmatpush1.bf16.msra.mxu0 0
        %1342 = vmatprep.subr.bf16.mxu0 0
        %1343 = vmatpush1.bf16.msra.mxu0 0
        %1344 = vmatprep.subr.bf16.mxu0 0
        %1345 = vmatpush1.bf16.msra.mxu0 0
        %1346 = vmatprep.subr.bf16.mxu0 0
        %1347 = vmatpush1.bf16.msra.mxu0 0
        %1348 = vmatprep.subr.bf16.mxu0 0
        %1349 = vmatpush1.bf16.msra.mxu0 0
        %1350 = vmatprep.subr.bf16.mxu0 0
        %1351 = vmatpush1.bf16.msra.mxu0 0
        %1352 = vmatprep.subr.bf16.mxu0 0
        %1353 = vmatpush1.bf16.msra.mxu0 0
        %1354 = vmatprep.subr.bf16.mxu0 0
        %1355 = vmatpush1.bf16.msra.mxu0 0
        %1356 = vmatprep.subr.bf16.mxu0 0
        %1357 = vmatpush1.bf16.msra.mxu0 0
        %1358 = vmatprep.subr.bf16.mxu0 0
        %1359 = vmatpush1.bf16.msra.mxu0 0
        %1360 = vmatprep.subr.bf16.mxu0 0
        %1361 = vmatpush1.bf16.msra.mxu0 0
        %1362 = vmatprep.mubr.bf16.mxu0 0
        %1363 = vmatmul.mubr.bf16.gmra.mrb[0].mxu0 %v1304
        %v1364 = vpop.f32.mrb[0].mxu0
        %v1365 = vadd.f32 %v1249, %v1364
        %v1366 = vpop.f32.mrb[0].mxu0
        %v1367 = vpop.f32.mrb[0].mxu0
        %v1368 = vadd.f32 %v1249, %v1367
        %v1369 = vpop.f32.mrb[0].mxu0
        %1370 = vmatprep.mubr.bf16.mxu0 0
        %1371 = vmatmul.mubr.bf16.gmra.mrb[0].mxu0 %v1307
        %v1372 = vpop.f32.mrb[0].mxu0
        %v1373 = vadd.f32 %v1249, %v1372
        %v1374 = vpop.f32.mrb[0].mxu0
        %v1375 = vpop.f32.mrb[0].mxu0
        %v1376 = vadd.f32 %v1249, %v1375
        %v1377 = vpop.f32.mrb[0].mxu0
        %1378 = vmatprep.mubr.bf16.mxu0 0
        %1379 = vmatmul.mubr.bf16.gmra.mrb[0].mxu0 %v1310
        %v1380 = vpop.f32.mrb[0].mxu0
        %v1381 = vadd.f32 %v1249, %v1380
        %v1382 = vpop.f32.mrb[0].mxu0
        %v1383 = vpop.f32.mrb[0].mxu0
        %v1384 = vadd.f32 %v1249, %v1383
        %v1385 = vpop.f32.mrb[0].mxu0
        %1386 = vmatprep.mubr.bf16.mxu0 0
        %1387 = vmatmul.mubr.bf16.gmra.mrb[0].mxu0 %v1313
        %v1388 = vpop.f32.mrb[0].mxu0
        %v1389 = vadd.f32 %v1249, %v1388
        %v1390 = vpop.f32.mrb[0].mxu0
        %v1391 = vpop.f32.mrb[0].mxu0
        %v1392 = vadd.f32 %v1249, %v1391
        %v1393 = vpop.f32.mrb[0].mxu0
        %1394 = vmatprep.mubr.bf16.mxu0 0
        %1395 = vmatmul.mubr.bf16.gmra.mrb[0].mxu0 %v1316
        %v1396 = vpop.f32.mrb[0].mxu0
        %v1397 = vadd.f32 %v1249, %v1396
        %v1398 = vpop.f32.mrb[0].mxu0
        %v1399 = vpop.f32.mrb[0].mxu0
        %v1400 = vadd.f32 %v1249, %v1399
        %v1401 = vpop.f32.mrb[0].mxu0
        %1402 = vmatprep.mubr.bf16.mxu0 0
        %1403 = vmatmul.mubr.bf16.gmra.mrb[0].mxu0 %v1319
        %v1404 = vpop.f32.mrb[0].mxu0
        %v1405 = vadd.f32 %v1249, %v1404
        %v1406 = vpop.f32.mrb[0].mxu0
        %v1407 = vpop.f32.mrb[0].mxu0
        %v1408 = vadd.f32 %v1249, %v1407
        %v1409 = vpop.f32.mrb[0].mxu0
        %1410 = vmatprep.mubr.bf16.mxu0 0
        %1411 = vmatmul.mubr.bf16.gmra.mrb[0].mxu0 %v1322
        %v1412 = vpop.f32.mrb[0].mxu0
        %v1413 = vadd.f32 %v1249, %v1412
        %v1414 = vpop.f32.mrb[0].mxu0
        %v1415 = vpop.f32.mrb[0].mxu0
        %v1416 = vadd.f32 %v1249, %v1415
        %v1417 = vpop.f32.mrb[0].mxu0
        %1418 = vmatprep.mubr.bf16.mxu0 0
        %1419 = vmatmul.mubr.bf16.gmra.mrb[0].mxu0 %v1325
        %v1420 = vpop.f32.mrb[0].mxu0
        %v1421 = vadd.f32 %v1249, %v1420
        %v1422 = vpop.f32.mrb[0].mxu0
        %v1423 = vpop.f32.mrb[0].mxu0
        %v1424 = vadd.f32 %v1249, %v1423
        %v1425 = vpop.f32.mrb[0].mxu0
        %1426 = vmatprep.mubr.bf16.mxu0 0
        %1427 = vmatmul.mubr.bf16.gmra.mrb[0].mxu0 %v1328
        %v1428 = vpop.f32.mrb[0].mxu0
        %v1429 = vadd.f32 %v1249, %v1428
        %v1430 = vpop.f32.mrb[0].mxu0
        %v1431 = vpop.f32.mrb[0].mxu0
        %v1432 = vadd.f32 %v1249, %v1431
        %v1433 = vpop.f32.mrb[0].mxu0
        %1434 = vdwg.mxu0
        %v1435 = vsel %vm971, 1, 0
        %v1436 = vsel %vm972, 1, 0
        %v1437 = vsel %vm973, 1, 0
        %v1438 = vsel %vm974, 1, 0
        %v1439 = vsel %vm975, 1, 0
        %v1440 = vsel %vm976, 1, 0
        %v1441 = vsel %vm977, 1, 0
        %v1442 = vsel %vm978, 1, 0
        %v1443 = vsel %vm979, 1, 0
        %v1444 = vsel %vm980, 1, 0
        %v1445 = vsel %vm981, 1, 0
        %v1446 = vsel %vm982, 1, 0
        %v1447 = vsel %vm983, 1, 0
        %v1448 = vsel %vm984, 1, 0
        %v1449 = vsel %vm985, 1, 0
        %v1450 = vsel %vm986, 1, 0
        %v1451 = vsel %vm987, 1, 0
        %v1452 = vsel %vm988, 1, 0
        %vm1453 = vcmp.eq.s32.totalorder %v1435, 1
        %vm1454 = vcmp.eq.s32.totalorder %v1436, 1
        %vm1455 = vcmp.eq.s32.totalorder %v1437, 1
        %vm1456 = vcmp.eq.s32.totalorder %v1438, 1
        %vm1457 = vcmp.eq.s32.totalorder %v1439, 1
        %vm1458 = vcmp.eq.s32.totalorder %v1440, 1
        %vm1459 = vcmp.eq.s32.totalorder %v1441, 1
        %vm1460 = vcmp.eq.s32.totalorder %v1442, 1
        %vm1461 = vcmp.eq.s32.totalorder %v1443, 1
        %vm1462 = vcmp.eq.s32.totalorder %v1444, 1
        %vm1463 = vcmp.eq.s32.totalorder %v1445, 1
        %vm1464 = vcmp.eq.s32.totalorder %v1446, 1
        %vm1465 = vcmp.eq.s32.totalorder %v1447, 1
        %vm1466 = vcmp.eq.s32.totalorder %v1448, 1
        %vm1467 = vcmp.eq.s32.totalorder %v1449, 1
        %vm1468 = vcmp.eq.s32.totalorder %v1450, 1
        %vm1469 = vcmp.eq.s32.totalorder %v1451, 1
        %vm1470 = vcmp.eq.s32.totalorder %v1452, 1
        %v1471 = vsel %vm1453, %v1154, %v1365
        %v1472 = vsel %vm1454, %v1157, %v1368
        %v1473 = vsel %vm1455, %v1162, %v1373
        %v1474 = vsel %vm1456, %v1165, %v1376
        %v1475 = vsel %vm1457, %v1170, %v1381
        %v1476 = vsel %vm1458, %v1173, %v1384
        %v1477 = vsel %vm1459, %v1178, %v1389
        %v1478 = vsel %vm1460, %v1181, %v1392
        %v1479 = vsel %vm1461, %v1186, %v1397
        %v1480 = vsel %vm1462, %v1189, %v1400
        %v1481 = vsel %vm1463, %v1194, %v1405
        %v1482 = vsel %vm1464, %v1197, %v1408
        %v1483 = vsel %vm1465, %v1202, %v1413
        %v1484 = vsel %vm1466, %v1205, %v1416
        %v1485 = vsel %vm1467, %v1210, %v1421
        %v1486 = vsel %vm1468, %v1213, %v1424
        %v1487 = vsel %vm1469, %v1218, %v1429
        %v1488 = vsel %vm1470, %v1221, %v1432
        %vm1489 = vcmask 261120
        %1490 = vst.msk [vmem:[%s430] sm:$0xff] %vm1489, %v1471
        %1491 = vst.msk [vmem:[%s430 + $0x8] sm:$0xff] %vm1489, %v1472
        %1492 = vst.msk [vmem:[%s430 + $0x10] sm:$0xff] %vm1489, %v1473
        %1493 = vst.msk [vmem:[%s430 + $0x18] sm:$0xff] %vm1489, %v1474
        %1494 = vst.msk [vmem:[%s430 + $0x20] sm:$0xff] %vm1489, %v1475
        %1495 = vst.msk [vmem:[%s430 + $0x28] sm:$0xff] %vm1489, %v1476
        %1496 = vst.msk [vmem:[%s430 + $0x30] sm:$0xff] %vm1489, %v1477
        %1497 = vst.msk [vmem:[%s430 + $0x38] sm:$0xff] %vm1489, %v1478
        %1498 = vst.msk [vmem:[%s430 + $0x40] sm:$0xff] %vm1489, %v1479
        %1499 = vst.msk [vmem:[%s430 + $0x48] sm:$0xff] %vm1489, %v1480
        %1500 = vst.msk [vmem:[%s430 + $0x50] sm:$0xff] %vm1489, %v1481
        %1501 = vst.msk [vmem:[%s430 + $0x58] sm:$0xff] %vm1489, %v1482
        %1502 = vst.msk [vmem:[%s430 + $0x60] sm:$0xff] %vm1489, %v1483
        %1503 = vst.msk [vmem:[%s430 + $0x68] sm:$0xff] %vm1489, %v1484
        %1504 = vst.msk [vmem:[%s430 + $0x70] sm:$0xff] %vm1489, %v1485
        %1505 = vst.msk [vmem:[%s430 + $0x78] sm:$0xff] %vm1489, %v1486
        %1506 = vst.msk [vmem:[%s430 + $0x80] sm:$0xff] %vm1489, %v1487
        %1507 = vst.msk [vmem:[%s430 + $0x88] sm:$0xff] %vm1489, %v1488
      $region56: #{cogvideox_patch_embed.1} parent=43 // pred_fallthru
        _
      %s1508 = smul.u32 18, %s24
      %p1509 = scmp.lt.s32.totalorder %s22, 1
      %s1510 = scalar_select %p1509, %s22, 1
      %p1511 = scmp.lt.s32.totalorder %s1508, 17
      %s1512 = scalar_select %p1511, %s1508, 17
      %p1513 = scmp.lt.s32.totalorder %s23, 0
      %s1514 = scalar_select %p1513, %s23, 0
      %s1515 = sadd.s32 %s1514, %s1512
      %s1516 = smul.addr %s1510, 18
      %s1517 = sadd.s32 %s1515, %s1516
      %s1518 = smul.addr %s1517, 8
      %s1519 = scalar_lea.vmem %s6, %s1518
      // Predicated region
      $region57: #{cogvideox_patch_embed.1} parent=43 // pred_check
        %p1520 = pneg %p226
      $region58: #{cogvideox_patch_embed.1} parent=43 // pred_check_branch
        %1522 = sbr.rel (%p1520) target = $region60
      $region59: #{cogvideox_patch_embed.1} parent=43 // pred_region
        %s1523 = smul.u32 18, %s24
      $region60: #{cogvideox_patch_embed.1} parent=43 // pred_fallthru
        _
    $region44: #{cogvideox_patch_embed.1} parent=5 // pred_fallthru
      _
    %p1524 = scmp.le.s32.totalorder 2, %s12
    // Predicated region
    $region61: #{cogvideox_patch_embed.1} parent=5 // pred_check
      %p1525 = pneg %p1524
    $region62: #{cogvideox_patch_embed.1} parent=5 // pred_check_branch
      %1527 = sbr.rel (%p1525) target = $region64
    $region63: #{cogvideox_patch_embed.1} parent=5 // pred_region
      %s1528 = ssub.s32 %s12, 2
      // Predicated region
      $region65: #{cogvideox_patch_embed.1} parent=63 // pred_check
        %p1529 = pneg %p232
      $region66: #{cogvideox_patch_embed.1} parent=63 // pred_check_branch
        %1531 = sbr.rel (%p1529) target = $region68
      $region67: #{cogvideox_patch_embed.1} parent=63 // pred_region
        %s1532 = smul.u32 18, %s27
        %p1533 = scmp.lt.s32.totalorder %s25, 1
        %s1534 = scalar_select %p1533, %s25, 1
        %p1535 = scmp.lt.s32.totalorder %s1532, 17
        %s1536 = scalar_select %p1535, %s1532, 17
        %p1537 = scmp.lt.s32.totalorder %s26, 0
        %s1538 = scalar_select %p1537, %s26, 0
        %s1539 = sadd.s32 %s1538, %s1536
        %s1540 = smul.addr %s1534, 18
        %s1541 = sadd.s32 %s1539, %s1540
        %s1542 = smul.addr %s1541, 8
        %s1543 = scalar_lea.vmem %s6, %s1542
      $region68: #{cogvideox_patch_embed.1} parent=63 // pred_fallthru
        _
    $region64: #{cogvideox_patch_embed.1} parent=5 // pred_fallthru
      _
  $region6: #{cogvideox_patch_embed.1} parent=0 // loop_footer
    %s16 = sadd.s32 1, %s12
  $region7: #{cogvideox_patch_embed.1} parent=0 // loop_footer_branch
    %11 = sbr.rel target = $region3
  $region8: #{cogvideox_patch_embed.1} parent=0 // loop_exit
    _

</llo_original>
